<compile_context>
chip_gen: v7x
topology: tpu7x:2x2x1
jax: 0.10.0
libtpu: 0.0.40
codegen_flags: <defaults>
</compile_context>

<pallas_src>
import functools

import jax
import jax.numpy as jnp
from jax import lax
from jax.experimental import pallas as pl
from jax.experimental.pallas import tpu as pltpu

EPS = 1e-5


def _pick_tile_m(m, cap):
    """Largest tile <= cap that divides m exactly (exact tiles keep the fused
    BN statistics correct without masking).  Never returns a tile > cap."""
    cap = max(1, min(cap, m))
    for tm in range(cap, 0, -1):            # prefer sublane-aligned tiles
        if m % tm == 0 and tm % 8 == 0:
            return tm
    for tm in range(cap, 0, -1):
        if m % tm == 0:
            return tm
    return 1


def _pick_divisor(n, cap):
    cap = max(1, min(cap, n))
    for d in range(cap, 0, -1):
        if n % d == 0:
            return d
    return 1


# ---------------------------------------------------------------------------
# Kernel A: per-channel partial sum / sum-of-squares (BN1 batch statistics)
# ---------------------------------------------------------------------------
def _channel_stats_kernel(x_ref, s_ref):
    x = x_ref[...]                                               # (TM, C)
    s_ref[0, 0:1, :] = jnp.sum(x, axis=0, keepdims=True)
    s_ref[0, 1:2, :] = jnp.sum(x * x, axis=0, keepdims=True)


def channel_stats(x2d, tm):
    m, c = x2d.shape
    nb = m // tm
    part = pl.pallas_call(
        _channel_stats_kernel,
        out_shape=jax.ShapeDtypeStruct((nb, 2, c), jnp.float32),
        grid=(nb,),
        in_specs=[pl.BlockSpec((tm, c), lambda i: (i, 0))],
        out_specs=pl.BlockSpec((1, 2, c), lambda i: (i, 0, 0)),
        compiler_params=pltpu.CompilerParams(
            dimension_semantics=("parallel",)),
    )(x2d)
    s = jnp.sum(part, axis=0)               # (2, C) -- tiny reduction
    mean = s[0] / m
    var = s[1] / m - mean * mean            # biased (training-mode BatchNorm)
    return mean, var


# ---------------------------------------------------------------------------
# Kernel B: fused BN1(affine) + ReLU + 1x1 conv (row-tiled matmul)
#           bf16 output + per-tile partial f32 stats of the output (for BN2)
# ---------------------------------------------------------------------------
def _bn_relu_conv1x1_kernel(x_ref, scale_ref, bias_ref, w_ref, o_ref, s_ref):
    a = jnp.maximum(x_ref[...] * scale_ref[...] + bias_ref[...], 0.0)
    out = jnp.dot(a.astype(jnp.bfloat16), w_ref[...],
                  preferred_element_type=jnp.float32)            # (TM, C1) f32
    o_ref[...] = out.astype(o_ref.dtype)                         # bf16 store
    # BN2 partial statistics from the f32 accumulator (no extra HBM pass).
    s_ref[0, 0:1, :] = jnp.sum(out, axis=0, keepdims=True)
    s_ref[0, 1:2, :] = jnp.sum(out * out, axis=0, keepdims=True)


def bn_relu_conv1x1(x2d, scale, bias, w_bf16, tm):
    m, cin = x2d.shape
    cout = w_bf16.shape[1]
    nb = m // tm
    out, part = pl.pallas_call(
        _bn_relu_conv1x1_kernel,
        out_shape=(jax.ShapeDtypeStruct((m, cout), jnp.bfloat16),
                   jax.ShapeDtypeStruct((nb, 2, cout), jnp.float32)),
        grid=(nb,),
        in_specs=[
            pl.BlockSpec((tm, cin), lambda i: (i, 0)),
            pl.BlockSpec((1, cin), lambda i: (0, 0)),
            pl.BlockSpec((1, cin), lambda i: (0, 0)),
            pl.BlockSpec((cin, cout), lambda i: (0, 0)),
        ],
        out_specs=(pl.BlockSpec((tm, cout), lambda i: (i, 0)),
                   pl.BlockSpec((1, 2, cout), lambda i: (i, 0, 0))),
        compiler_params=pltpu.CompilerParams(
            dimension_semantics=("parallel",)),
    )(x2d, scale, bias, w_bf16)
    return out, part


# ---------------------------------------------------------------------------
# Kernel C: fused BN2(affine) + ReLU + 3x3 conv (pad=1) + channel concat
#           row strips with a 1-row halo, single stacked-N matmul per strip
# ---------------------------------------------------------------------------
def _bn_relu_conv3x3_concat_kernel(y_mid_ref, y_top_ref, y_bot_ref, x_ref,
                                   scale_ref, bias_ref, w_ref, o_ref):
    _, S, W, C1 = y_mid_ref.shape
    G3 = w_ref.shape[1]
    G = G3 // 3
    i = pl.program_id(1)
    last = pl.num_programs(1) - 1

    # Assemble the (S+2)-row window: halo row above, strip, halo row below.
    y = jnp.concatenate([y_top_ref[0], y_mid_ref[0], y_bot_ref[0]], axis=0)

    # BN2 affine + ReLU in f32 (y is bf16, upcast first).
    act = jnp.maximum(
        y.astype(jnp.float32) * scale_ref[...] + bias_ref[...], 0.0)

    # Zero halo rows that fall outside the image (zero-padded conv input).
    row = lax.broadcasted_iota(jnp.int32, (S + 2, 1, 1), 0)
    valid = ((row > 0) | (i > 0)) & ((row < S + 1) | (i < last))
    act = act * valid.astype(act.dtype)

    # Width taps via XLU roll + a single boundary-column mask each
    # (no full-size int32 temporaries).
    col = lax.broadcasted_iota(jnp.int32, (1, W, 1), 1)
    a_l = pltpu.roll(act, 1, axis=1) * (col >= 1).astype(act.dtype)       # a[w-1]
    a_r = pltpu.roll(act, W - 1, axis=1) * (col <= W - 2).astype(act.dtype)  # a[w+1]

    # (S+2, W, 3*C1) bf16, channel blocks ordered kx = 0, 1, 2.
    a_cat = jnp.concatenate([a_l, act, a_r], axis=-1).astype(jnp.bfloat16)

    # One stacked-N matmul: K = 3*C1, N = 3*growth (ky blocks along N).
    z = jnp.dot(a_cat.reshape((S + 2) * W, 3 * C1), w_ref[...],
                preferred_element_type=jnp.float32).reshape(S + 2, W, G3)

    # Height taps: out[p] = z_ky0[p] + z_ky1[p+1] + z_ky2[p+2]  (registers,
    # no accumulator scratch / RMW).
    out = (z[0:S, :, 0:G]
           + z[1:S + 1, :, G:2 * G]
           + z[2:S + 2, :, 2 * G:3 * G])

    # Fused concat as two channel-slice stores (no concatenated temporary).
    o_ref[0, :, :, :G] = out.astype(o_ref.dtype)
    o_ref[0, :, :, G:] = x_ref[0].astype(o_ref.dtype)


def bn_relu_conv3x3_concat(y, x_res, scale, bias, w_stack, strip_h):
    n, h, w, c1 = y.shape
    cin = x_res.shape[3]
    g = w_stack.shape[1] // 3
    n_strips = h // strip_h

    def mid_map(b, i):
        return (b, i, 0, 0)

    def top_map(b, i):       # row above the strip (block size 1 along H)
        return (b, jnp.maximum(i * strip_h - 1, 0), 0, 0)

    def bot_map(b, i):       # row below the strip
        return (b, jnp.minimum(i * strip_h + strip_h, h - 1), 0, 0)

    return pl.pallas_call(
        _bn_relu_conv3x3_concat_kernel,
        out_shape=jax.ShapeDtypeStruct((n, h, w, g + cin), x_res.dtype),
        grid=(n, n_strips),
        in_specs=[
            pl.BlockSpec((1, strip_h, w, c1), mid_map),
            pl.BlockSpec((1, 1, w, c1), top_map),
            pl.BlockSpec((1, 1, w, c1), bot_map),
            pl.BlockSpec((1, strip_h, w, cin), mid_map),
            pl.BlockSpec((1, c1), lambda b, i: (0, 0)),
            pl.BlockSpec((1, c1), lambda b, i: (0, 0)),
            pl.BlockSpec((3 * c1, 3 * g), lambda b, i: (0, 0)),
        ],
        out_specs=pl.BlockSpec((1, strip_h, w, g + cin), mid_map),
        compiler_params=pltpu.CompilerParams(
            dimension_semantics=("parallel", "parallel"),
            vmem_limit_bytes=64 * 1024 * 1024),
    )(y, y, y, x_res, scale, bias, w_stack)


# ---------------------------------------------------------------------------
# Full Bottleneck forward
# ---------------------------------------------------------------------------
def bottleneck_forward(x_nchw, params, *, tile_m=1024, strip_rows=16):
    # NOTE: when stacking many Bottlenecks keep data NHWC end-to-end; these
    # transposes only exist to match the PyTorch NCHW boundary.
    x = jnp.transpose(x_nchw, (0, 2, 3, 1)).astype(jnp.float32)   # NHWC
    n, h, w, cin = x.shape
    m = n * h * w
    tm = _pick_tile_m(m, tile_m)
    x2d = x.reshape(m, cin)

    # BN1 (training-mode batch stats) folded into a per-channel affine.
    mean1, var1 = channel_stats(x2d, tm)
    scale1 = params["gamma1"] * lax.rsqrt(var1 + EPS)
    bias1 = params["beta1"] - mean1 * scale1

    w1 = params["w1"].astype(jnp.bfloat16)                        # (Cin, C1)
    c1 = w1.shape[1]
    out1_2d, part2 = bn_relu_conv1x1(
        x2d, scale1.reshape(1, cin), bias1.reshape(1, cin), w1, tm)
    out1 = out1_2d.reshape(n, h, w, c1)                           # bf16

    # BN2 stats from kernel-B partial sums (no extra full-tensor HBM pass).
    s2 = jnp.sum(part2, axis=0)
    mean2 = s2[0] / m
    var2 = s2[1] / m - mean2 * mean2
    scale2 = params["gamma2"] * lax.rsqrt(var2 + EPS)
    bias2 = params["beta2"] - mean2 * scale2

    growth = params["w2"].shape[3]
    # HWIO (3,3,C1,G): flatten (kx,C1) into K, stack ky along N -> (3*C1, 3*G)
    # so kernel C's single matmul column blocks are [ky=0 | ky=1 | ky=2].
    w2_stack = jnp.transpose(
        params["w2"].reshape(3, 3 * c1, growth), (1, 0, 2)
    ).reshape(3 * c1, 3 * growth).astype(jnp.bfloat16)

    # Row strips for kernel C (re-derive per VMEM budget at real shapes:
    # v5e/v6e 128 MiB, v7x 64 MiB -> smaller strips).
    sh = _pick_divisor(h, strip_rows)
    out = bn_relu_conv3x3_concat(out1, x, scale2.reshape(1, c1),
                                 bias2.reshape(1, c1), w2_stack, sh)
    return jnp.transpose(out, (0, 3, 1, 2))                       # back to NCHW


# ---------------------------------------------------------------------------
# Pure-JAX reference (NCHW, PyTorch semantics, f32) for verification.
# ---------------------------------------------------------------------------
def bottleneck_reference(x, params):
    def bn_relu(v, gamma, beta):
        mu = jnp.mean(v, axis=(0, 2, 3), keepdims=True)
        va = jnp.mean((v - mu) ** 2, axis=(0, 2, 3), keepdims=True)
        hh = gamma.reshape(1, -1, 1, 1) * (v - mu) / jnp.sqrt(va + EPS) \
            + beta.reshape(1, -1, 1, 1)
        return jnp.maximum(hh, 0.0)

    a1 = bn_relu(x, params["gamma1"], params["beta1"])
    w1 = jnp.transpose(params["w1"], (1, 0))[:, :, None, None]    # OIHW
    o1 = lax.conv_general_dilated(
        a1, w1, (1, 1), "VALID", dimension_numbers=("NCHW", "OIHW", "NCHW"))
    a2 = bn_relu(o1, params["gamma2"], params["beta2"])
    w2 = jnp.transpose(params["w2"], (3, 2, 0, 1))                # OIHW
    o2 = lax.conv_general_dilated(
        a2, w2, (1, 1), ((1, 1), (1, 1)),
        dimension_numbers=("NCHW", "OIHW", "NCHW"))
    return jnp.concatenate([o2, x], axis=1)


def init_params(key, in_planes, growth_rate):
    c1 = 4 * growth_rate
    k1, k2, kx = jax.random.split(key, 3)
    # conv1 weight, torch (c1, in_planes, 1, 1) -> stored (in_planes, c1)
    w1 = 0.2 * jax.random.normal(k1, (in_planes, c1), jnp.float32)
    # conv2 weight, torch (growth, c1, 3, 3) -> stored HWIO (3, 3, c1, growth)
    w2 = 0.1 * jax.random.normal(k2, (3, 3, c1, growth_rate), jnp.float32)
    params = dict(
        w1=w1, w2=w2,
        gamma1=jnp.ones((in_planes,), jnp.float32),
        beta1=jnp.zeros((in_planes,), jnp.float32),
        gamma2=jnp.ones((c1,), jnp.float32),
        beta2=jnp.zeros((c1,), jnp.float32),
    )
    return params, kx


if __name__ == "__main__":
    in_planes, growth_rate = 4, 4
    N, H, W = 2, 16, 16

    params, kx = init_params(jax.random.PRNGKey(0), in_planes, growth_rate)
    x = jax.random.normal(kx, (N, in_planes, H, W), jnp.float32)

    # tile_m=128 / strip_rows=8 exercise multi-step grids (4 row tiles for
    # A/B, 2x2 strips for C, including both halo-boundary cases) at toy size.
    fwd = jax.jit(functools.partial(bottleneck_forward,
                                    tile_m=128, strip_rows=8))
    out = jax.block_until_ready(fwd(x, params))
    ref = jax.block_until_ready(bottleneck_reference(x, params))

    assert out.shape == (N, growth_rate + in_planes, H, W), out.shape
    err = float(jnp.max(jnp.abs(out - ref)))
    # bf16 MXU operands + bf16 intermediate storage vs f32 reference.
    assert err < 8e-2, f"max abs err {err}"
    print("KERNEL_OK")
</pallas_src>

<mosaic_0001>
module attributes {stable_mosaic.version = 11 : i64} {
  func.func @_bn_relu_conv1x1_kernel(%arg0: i32, %arg1: memref<128x4xf32, #tpu.memory_space<vmem>>, %arg2: memref<1x4xf32, #tpu.memory_space<vmem>>, %arg3: memref<1x4xf32, #tpu.memory_space<vmem>>, %arg4: memref<4x16xbf16, #tpu.memory_space<vmem>>, %arg5: memref<128x16xbf16, #tpu.memory_space<vmem>>, %arg6: memref<1x2x16xf32, #tpu.memory_space<vmem>>) attributes {dimension_semantics = [#tpu.dimension_semantics<parallel>], iteration_bounds = array<i64: 4>, scalar_prefetch = 0 : i64, scratch_operands = 0 : i64, tpu.core_type = #tpu.core_type<tc>, window_params = [{transform_indices = @transform_0, window_bounds = array<i64: 128, 4>}, {pipeline_mode = #tpu.pipeline_mode<synchronous>, transform_indices = @transform_1, window_bounds = array<i64: 1, 4>}, {pipeline_mode = #tpu.pipeline_mode<synchronous>, transform_indices = @transform_2, window_bounds = array<i64: 1, 4>}, {pipeline_mode = #tpu.pipeline_mode<synchronous>, transform_indices = @transform_3, window_bounds = array<i64: 4, 16>}, {transform_indices = @transform_4, window_bounds = array<i64: 128, 16>}, {transform_indices = @transform_5, window_bounds = array<i64: 1, 2, 16>}]} {
    %c0 = arith.constant 0 : index
    %c0_0 = arith.constant 0 : index
    %0 = vector.load %arg1[%c0, %c0_0] : memref<128x4xf32, #tpu.memory_space<vmem>>, vector<128x4xf32>
    %c0_1 = arith.constant 0 : index
    %c0_2 = arith.constant 0 : index
    %1 = vector.load %arg2[%c0_1, %c0_2] : memref<1x4xf32, #tpu.memory_space<vmem>>, vector<1x4xf32>
    %2 = vector.broadcast %1 : vector<1x4xf32> to vector<128x4xf32>
    %3 = arith.mulf %0, %2 : vector<128x4xf32>
    %c0_3 = arith.constant 0 : index
    %c0_4 = arith.constant 0 : index
    %4 = vector.load %arg3[%c0_3, %c0_4] : memref<1x4xf32, #tpu.memory_space<vmem>>, vector<1x4xf32>
    %5 = vector.broadcast %4 : vector<1x4xf32> to vector<128x4xf32>
    %6 = arith.addf %3, %5 : vector<128x4xf32>
    %cst = arith.constant 0.000000e+00 : f32
    %7 = vector.broadcast %cst : f32 to vector<128x4xf32>
    %8 = arith.maximumf %6, %7 : vector<128x4xf32>
    %9 = arith.truncf %8 : vector<128x4xf32> to vector<128x4xbf16>
    %c0_5 = arith.constant 0 : index
    %c0_6 = arith.constant 0 : index
    %10 = vector.load %arg4[%c0_5, %c0_6] : memref<4x16xbf16, #tpu.memory_space<vmem>>, vector<4x16xbf16>
    %cst_7 = arith.constant dense<0.000000e+00> : vector<128x16xf32>
    %11 = tpu.matmul %9, %10, %cst_7 {dimension_numbers = #tpu.dot_dimension_numbers<[1], [0], [0], [1], [0, 0, 1, 1], [], []>} : vector<128x4xbf16>, vector<4x16xbf16>, vector<128x16xf32> -> vector<128x16xf32>
    %12 = arith.truncf %11 : vector<128x16xf32> to vector<128x16xbf16>
    %c0_8 = arith.constant 0 : index
    %c0_9 = arith.constant 0 : index
    %13 = vector.load %arg5[%c0_8, %c0_9] : memref<128x16xbf16, #tpu.memory_space<vmem>>, vector<128x16xbf16>
    tpu.vector_store %arg5[%c0_8, %c0_9], %12 {strides = array<i32>} : memref<128x16xbf16, #tpu.memory_space<vmem>>, vector<128x16xbf16>,
    %cst_10 = arith.constant dense<0.000000e+00> : vector<16xf32>
    %14 = vector.multi_reduction <add>, %11, %cst_10 [0] : vector<128x16xf32> to vector<16xf32>
    %15 = vector.shape_cast %14 : vector<16xf32> to vector<1x16xf32>
    %c0_11 = arith.constant 0 : index
    %c0_12 = arith.constant 0 : index
    %c0_13 = arith.constant 0 : index
    %16 = vector.load %arg6[%c0_11, %c0_12, %c0_13] : memref<1x2x16xf32, #tpu.memory_space<vmem>>, vector<1x1x16xf32>
    %17 = vector.shape_cast %16 : vector<1x1x16xf32> to vector<1x16xf32>
    %18 = vector.shape_cast %15 : vector<1x16xf32> to vector<1x1x16xf32>
    tpu.vector_store %arg6[%c0_11, %c0_12, %c0_13], %18 {strides = array<i32>} : memref<1x2x16xf32, #tpu.memory_space<vmem>>, vector<1x1x16xf32>,
    %19 = arith.mulf %11, %11 : vector<128x16xf32>
    %cst_14 = arith.constant dense<0.000000e+00> : vector<16xf32>
    %20 = vector.multi_reduction <add>, %19, %cst_14 [0] : vector<128x16xf32> to vector<16xf32>
    %21 = vector.shape_cast %20 : vector<16xf32> to vector<1x16xf32>
    %c0_15 = arith.constant 0 : index
    %c1 = arith.constant 1 : index
    %c0_16 = arith.constant 0 : index
    %22 = vector.load %arg6[%c0_15, %c1, %c0_16] : memref<1x2x16xf32, #tpu.memory_space<vmem>>, vector<1x1x16xf32>
    %23 = vector.shape_cast %22 : vector<1x1x16xf32> to vector<1x16xf32>
    %24 = vector.shape_cast %21 : vector<1x16xf32> to vector<1x1x16xf32>
    tpu.vector_store %arg6[%c0_15, %c1, %c0_16], %24 {strides = array<i32>} : memref<1x2x16xf32, #tpu.memory_space<vmem>>, vector<1x1x16xf32>,
    return
  }
  func.func @transform_0(%arg0: i32) -> (i32, i32) {
    %c0_i32 = arith.constant 0 : i32
    %c0_i32_0 = arith.constant 0 : i32
    return %arg0, %c0_i32 : i32, i32
  }
  func.func @transform_1(%arg0: i32) -> (i32, i32) {
    %c0_i32 = arith.constant 0 : i32
    %c0_i32_0 = arith.constant 0 : i32
    %c0_i32_1 = arith.constant 0 : i32
    return %c0_i32, %c0_i32_0 : i32, i32
  }
  func.func @transform_2(%arg0: i32) -> (i32, i32) {
    %c0_i32 = arith.constant 0 : i32
    %c0_i32_0 = arith.constant 0 : i32
    %c0_i32_1 = arith.constant 0 : i32
    return %c0_i32, %c0_i32_0 : i32, i32
  }
  func.func @transform_3(%arg0: i32) -> (i32, i32) {
    %c0_i32 = arith.constant 0 : i32
    %c0_i32_0 = arith.constant 0 : i32
    %c0_i32_1 = arith.constant 0 : i32
    return %c0_i32, %c0_i32_0 : i32, i32
  }
  func.func @transform_4(%arg0: i32) -> (i32, i32) {
    %c0_i32 = arith.constant 0 : i32
    %c0_i32_0 = arith.constant 0 : i32
    return %arg0, %c0_i32 : i32, i32
  }
  func.func @transform_5(%arg0: i32) -> (i32, i32, i32) {
    %c0_i32 = arith.constant 0 : i32
    %c0_i32_0 = arith.constant 0 : i32
    %c0_i32_1 = arith.constant 0 : i32
    return %arg0, %c0_i32, %c0_i32_0 : i32, i32, i32
  }
}

module attributes {stable_mosaic.version = 11 : i64} {
  func.func @_channel_stats_kernel(%arg0: i32, %arg1: memref<128x4xf32, #tpu.memory_space<vmem>>, %arg2: memref<1x2x4xf32, #tpu.memory_space<vmem>>) attributes {dimension_semantics = [#tpu.dimension_semantics<parallel>], iteration_bounds = array<i64: 4>, scalar_prefetch = 0 : i64, scratch_operands = 0 : i64, tpu.core_type = #tpu.core_type<tc>, window_params = [{transform_indices = @transform_0, window_bounds = array<i64: 128, 4>}, {transform_indices = @transform_1, window_bounds = array<i64: 1, 2, 4>}]} {
    %c0 = arith.constant 0 : index
    %c0_0 = arith.constant 0 : index
    %0 = vector.load %arg1[%c0, %c0_0] : memref<128x4xf32, #tpu.memory_space<vmem>>, vector<128x4xf32>
    %cst = arith.constant dense<0.000000e+00> : vector<4xf32>
    %1 = vector.multi_reduction <add>, %0, %cst [0] : vector<128x4xf32> to vector<4xf32>
    %2 = vector.shape_cast %1 : vector<4xf32> to vector<1x4xf32>
    %c0_1 = arith.constant 0 : index
    %c0_2 = arith.constant 0 : index
    %c0_3 = arith.constant 0 : index
    %3 = vector.load %arg2[%c0_1, %c0_2, %c0_3] : memref<1x2x4xf32, #tpu.memory_space<vmem>>, vector<1x1x4xf32>
    %4 = vector.shape_cast %3 : vector<1x1x4xf32> to vector<1x4xf32>
    %5 = vector.shape_cast %2 : vector<1x4xf32> to vector<1x1x4xf32>
    tpu.vector_store %arg2[%c0_1, %c0_2, %c0_3], %5 {strides = array<i32>} : memref<1x2x4xf32, #tpu.memory_space<vmem>>, vector<1x1x4xf32>,
    %6 = arith.mulf %0, %0 : vector<128x4xf32>
    %cst_4 = arith.constant dense<0.000000e+00> : vector<4xf32>
    %7 = vector.multi_reduction <add>, %6, %cst_4 [0] : vector<128x4xf32> to vector<4xf32>
    %8 = vector.shape_cast %7 : vector<4xf32> to vector<1x4xf32>
    %c0_5 = arith.constant 0 : index
    %c1 = arith.constant 1 : index
    %c0_6 = arith.constant 0 : index
    %9 = vector.load %arg2[%c0_5, %c1, %c0_6] : memref<1x2x4xf32, #tpu.memory_space<vmem>>, vector<1x1x4xf32>
    %10 = vector.shape_cast %9 : vector<1x1x4xf32> to vector<1x4xf32>
    %11 = vector.shape_cast %8 : vector<1x4xf32> to vector<1x1x4xf32>
    tpu.vector_store %arg2[%c0_5, %c1, %c0_6], %11 {strides = array<i32>} : memref<1x2x4xf32, #tpu.memory_space<vmem>>, vector<1x1x4xf32>,
    return
  }
  func.func @transform_0(%arg0: i32) -> (i32, i32) {
    %c0_i32 = arith.constant 0 : i32
    %c0_i32_0 = arith.constant 0 : i32
    return %arg0, %c0_i32 : i32, i32
  }
  func.func @transform_1(%arg0: i32) -> (i32, i32, i32) {
    %c0_i32 = arith.constant 0 : i32
    %c0_i32_0 = arith.constant 0 : i32
    %c0_i32_1 = arith.constant 0 : i32
    return %arg0, %c0_i32, %c0_i32_0 : i32, i32, i32
  }
}

module attributes {stable_mosaic.version = 11 : i64} {
  func.func @_bn_relu_conv3x3_concat_kernel(%arg0: i32, %arg1: i32, %arg2: memref<1x8x16x16xbf16, #tpu.memory_space<vmem>>, %arg3: memref<1x1x16x16xbf16, #tpu.memory_space<vmem>>, %arg4: memref<1x1x16x16xbf16, #tpu.memory_space<vmem>>, %arg5: memref<1x8x16x4xf32, #tpu.memory_space<vmem>>, %arg6: memref<1x16xf32, #tpu.memory_space<vmem>>, %arg7: memref<1x16xf32, #tpu.memory_space<vmem>>, %arg8: memref<48x12xbf16, #tpu.memory_space<vmem>>, %arg9: memref<1x8x16x8xf32, #tpu.memory_space<vmem>>) attributes {dimension_semantics = [#tpu.dimension_semantics<parallel>, #tpu.dimension_semantics<parallel>], iteration_bounds = array<i64: 2, 2>, scalar_prefetch = 0 : i64, scratch_operands = 0 : i64, tpu.core_type = #tpu.core_type<tc>, window_params = [{transform_indices = @transform_0, window_bounds = array<i64: 1, 8, 16, 16>}, {transform_indices = @transform_1, window_bounds = array<i64: 1, 1, 16, 16>}, {transform_indices = @transform_2, window_bounds = array<i64: 1, 1, 16, 16>}, {transform_indices = @transform_3, window_bounds = array<i64: 1, 8, 16, 4>}, {pipeline_mode = #tpu.pipeline_mode<synchronous>, transform_indices = @transform_4, window_bounds = array<i64: 1, 16>}, {pipeline_mode = #tpu.pipeline_mode<synchronous>, transform_indices = @transform_5, window_bounds = array<i64: 1, 16>}, {pipeline_mode = #tpu.pipeline_mode<synchronous>, transform_indices = @transform_6, window_bounds = array<i64: 48, 12>}, {transform_indices = @transform_7, window_bounds = array<i64: 1, 8, 16, 8>}]} {
    %c0 = arith.constant 0 : index
    %c0_0 = arith.constant 0 : index
    %c0_1 = arith.constant 0 : index
    %c0_2 = arith.constant 0 : index
    %0 = vector.load %arg3[%c0, %c0_0, %c0_1, %c0_2] : memref<1x1x16x16xbf16, #tpu.memory_space<vmem>>, vector<1x1x16x16xbf16>
    %1 = vector.shape_cast %0 : vector<1x1x16x16xbf16> to vector<1x16x16xbf16>
    %c0_3 = arith.constant 0 : index
    %c0_4 = arith.constant 0 : index
    %c0_5 = arith.constant 0 : index
    %c0_6 = arith.constant 0 : index
    %2 = vector.load %arg2[%c0_3, %c0_4, %c0_5, %c0_6] : memref<1x8x16x16xbf16, #tpu.memory_space<vmem>>, vector<1x8x16x16xbf16>
    %3 = vector.shape_cast %2 : vector<1x8x16x16xbf16> to vector<8x16x16xbf16>
    %c0_7 = arith.constant 0 : index
    %c0_8 = arith.constant 0 : index
    %c0_9 = arith.constant 0 : index
    %c0_10 = arith.constant 0 : index
    %4 = vector.load %arg4[%c0_7, %c0_8, %c0_9, %c0_10] : memref<1x1x16x16xbf16, #tpu.memory_space<vmem>>, vector<1x1x16x16xbf16>
    %5 = vector.shape_cast %4 : vector<1x1x16x16xbf16> to vector<1x16x16xbf16>
    %6 = tpu.concatenate %1, %3, %5 in 0 : vector<1x16x16xbf16>, vector<8x16x16xbf16>, vector<1x16x16xbf16> -> vector<10x16x16xbf16>
    %7 = arith.extf %6 : vector<10x16x16xbf16> to vector<10x16x16xf32>
    %c0_11 = arith.constant 0 : index
    %c0_12 = arith.constant 0 : index
    %8 = vector.load %arg6[%c0_11, %c0_12] : memref<1x16xf32, #tpu.memory_space<vmem>>, vector<1x16xf32>
    %9 = vector.shape_cast %8 : vector<1x16xf32> to vector<1x1x16xf32>
    %10 = vector.broadcast %9 : vector<1x1x16xf32> to vector<10x16x16xf32>
    %11 = arith.mulf %7, %10 : vector<10x16x16xf32>
    %c0_13 = arith.constant 0 : index
    %c0_14 = arith.constant 0 : index
    %12 = vector.load %arg7[%c0_13, %c0_14] : memref<1x16xf32, #tpu.memory_space<vmem>>, vector<1x16xf32>
    %13 = vector.shape_cast %12 : vector<1x16xf32> to vector<1x1x16xf32>
    %14 = vector.broadcast %13 : vector<1x1x16xf32> to vector<10x16x16xf32>
    %15 = arith.addf %11, %14 : vector<10x16x16xf32>
    %cst = arith.constant 0.000000e+00 : f32
    %16 = vector.broadcast %cst : f32 to vector<10x16x16xf32>
    %17 = arith.maximumf %15, %16 : vector<10x16x16xf32>
    %18 = tpu.iota {dimensions = array<i32: 0>} : vector<10x1x1xi32>
    %c0_i32 = arith.constant 0 : i32
    %19 = vector.broadcast %c0_i32 : i32 to vector<10x1x1xi32>
    %20 = arith.cmpi sgt, %18, %19 : vector<10x1x1xi32>
    %c0_i32_15 = arith.constant 0 : i32
    %21 = arith.cmpi sgt, %arg1, %c0_i32_15 : i32
    %22 = vector.broadcast %21 : i1 to vector<10x1x1xi1>
    %23 = arith.ori %20, %22 : vector<10x1x1xi1>
    %c9_i32 = arith.constant 9 : i32
    %24 = vector.broadcast %c9_i32 : i32 to vector<10x1x1xi32>
    %25 = arith.cmpi slt, %18, %24 : vector<10x1x1xi32>
    %c1_i32 = arith.constant 1 : i32
    %26 = arith.cmpi slt, %arg1, %c1_i32 : i32
    %27 = vector.broadcast %26 : i1 to vector<10x1x1xi1>
    %28 = arith.ori %25, %27 : vector<10x1x1xi1>
    %29 = arith.andi %23, %28 : vector<10x1x1xi1>
    %30 = arith.extui %29 : vector<10x1x1xi1> to vector<10x1x1xi32>
    %31 = arith.sitofp %30 : vector<10x1x1xi32> to vector<10x1x1xf32>
    %32 = vector.broadcast %31 : vector<10x1x1xf32> to vector<10x16x16xf32>
    %33 = arith.mulf %17, %32 : vector<10x16x16xf32>
    %34 = tpu.iota {dimensions = array<i32: 1>} : vector<1x16x1xi32>
    %c1_i32_16 = arith.constant 1 : i32
    %35 = tpu.dynamic_rotate %33 by %c1_i32_16 dim 1 : vector<10x16x16xf32>, i32 -> vector<10x16x16xf32>
    %c1_i32_17 = arith.constant 1 : i32
    %36 = vector.broadcast %c1_i32_17 : i32 to vector<1x16x1xi32>
    %37 = arith.cmpi sge, %34, %36 : vector<1x16x1xi32>
    %38 = arith.extui %37 : vector<1x16x1xi1> to vector<1x16x1xi32>
    %39 = arith.sitofp %38 : vector<1x16x1xi32> to vector<1x16x1xf32>
    %40 = vector.broadcast %39 : vector<1x16x1xf32> to vector<10x16x16xf32>
    %41 = arith.mulf %35, %40 : vector<10x16x16xf32>
    %c15_i32 = arith.constant 15 : i32
    %42 = tpu.dynamic_rotate %33 by %c15_i32 dim 1 : vector<10x16x16xf32>, i32 -> vector<10x16x16xf32>
    %c14_i32 = arith.constant 14 : i32
    %43 = vector.broadcast %c14_i32 : i32 to vector<1x16x1xi32>
    %44 = arith.cmpi sle, %34, %43 : vector<1x16x1xi32>
    %45 = arith.extui %44 : vector<1x16x1xi1> to vector<1x16x1xi32>
    %46 = arith.sitofp %45 : vector<1x16x1xi32> to vector<1x16x1xf32>
    %47 = vector.broadcast %46 : vector<1x16x1xf32> to vector<10x16x16xf32>
    %48 = arith.mulf %42, %47 : vector<10x16x16xf32>
    %49 = tpu.concatenate %41, %33, %48 in 2 : vector<10x16x16xf32>, vector<10x16x16xf32>, vector<10x16x16xf32> -> vector<10x16x48xf32>
    %50 = arith.truncf %49 : vector<10x16x48xf32> to vector<10x16x48xbf16>
    %51 = vector.shape_cast %50 : vector<10x16x48xbf16> to vector<160x48xbf16>
    %c0_18 = arith.constant 0 : index
    %c0_19 = arith.constant 0 : index
    %52 = vector.load %arg8[%c0_18, %c0_19] : memref<48x12xbf16, #tpu.memory_space<vmem>>, vector<48x12xbf16>
    %cst_20 = arith.constant dense<0.000000e+00> : vector<160x12xf32>
    %53 = tpu.matmul %51, %52, %cst_20 {dimension_numbers = #tpu.dot_dimension_numbers<[1], [0], [0], [1], [0, 0, 1, 1], [], []>} : vector<160x48xbf16>, vector<48x12xbf16>, vector<160x12xf32> -> vector<160x12xf32>
    %54 = vector.shape_cast %53 : vector<160x12xf32> to vector<10x16x12xf32>
    %55 = vector.extract_strided_slice %54 {offsets = [0, 0, 0], sizes = [8, 16, 4], strides = [1, 1, 1]} : vector<10x16x12xf32> to vector<8x16x4xf32>
    %56 = vector.extract_strided_slice %54 {offsets = [1, 0, 4], sizes = [8, 16, 4], strides = [1, 1, 1]} : vector<10x16x12xf32> to vector<8x16x4xf32>
    %57 = arith.addf %55, %56 : vector<8x16x4xf32>
    %58 = vector.extract_strided_slice %54 {offsets = [2, 0, 8], sizes = [8, 16, 4], strides = [1, 1, 1]} : vector<10x16x12xf32> to vector<8x16x4xf32>
    %59 = arith.addf %57, %58 : vector<8x16x4xf32>
    %c0_21 = arith.constant 0 : index
    %c0_22 = arith.constant 0 : index
    %c0_23 = arith.constant 0 : index
    %c0_24 = arith.constant 0 : index
    %60 = vector.load %arg9[%c0_21, %c0_22, %c0_23, %c0_24] : memref<1x8x16x8xf32, #tpu.memory_space<vmem>>, vector<1x8x16x4xf32>
    %61 = vector.shape_cast %60 : vector<1x8x16x4xf32> to vector<8x16x4xf32>
    %62 = vector.shape_cast %59 : vector<8x16x4xf32> to vector<1x8x16x4xf32>
    tpu.vector_store %arg9[%c0_21, %c0_22, %c0_23, %c0_24], %62 {strides = array<i32>} : memref<1x8x16x8xf32, #tpu.memory_space<vmem>>, vector<1x8x16x4xf32>,
    %c0_25 = arith.constant 0 : index
    %c0_26 = arith.constant 0 : index
    %c0_27 = arith.constant 0 : index
    %c0_28 = arith.constant 0 : index
    %63 = vector.load %arg5[%c0_25, %c0_26, %c0_27, %c0_28] : memref<1x8x16x4xf32, #tpu.memory_space<vmem>>, vector<1x8x16x4xf32>
    %64 = vector.shape_cast %63 : vector<1x8x16x4xf32> to vector<8x16x4xf32>
    %c0_29 = arith.constant 0 : index
    %c0_30 = arith.constant 0 : index
    %c0_31 = arith.constant 0 : index
    %c4 = arith.constant 4 : index
    %65 = vector.load %arg9[%c0_29, %c0_30, %c0_31, %c4] : memref<1x8x16x8xf32, #tpu.memory_space<vmem>>, vector<1x8x16x4xf32>
    %66 = vector.shape_cast %65 : vector<1x8x16x4xf32> to vector<8x16x4xf32>
    %67 = vector.shape_cast %64 : vector<8x16x4xf32> to vector<1x8x16x4xf32>
    tpu.vector_store %arg9[%c0_29, %c0_30, %c0_31, %c4], %67 {strides = array<i32>} : memref<1x8x16x8xf32, #tpu.memory_space<vmem>>, vector<1x8x16x4xf32>,
    return
  }
  func.func @transform_0(%arg0: i32, %arg1: i32) -> (i32, i32, i32, i32) {
    %c0_i32 = arith.constant 0 : i32
    %c0_i32_0 = arith.constant 0 : i32
    %c0_i32_1 = arith.constant 0 : i32
    return %arg0, %arg1, %c0_i32, %c0_i32_0 : i32, i32, i32, i32
  }
  func.func @transform_1(%arg0: i32, %arg1: i32) -> (i32, i32, i32, i32) {
    %c8_i32 = arith.constant 8 : i32
    %0 = arith.muli %arg1, %c8_i32 : i32
    %c1_i32 = arith.constant 1 : i32
    %1 = arith.subi %0, %c1_i32 : i32
    %c0_i32 = arith.constant 0 : i32
    %2 = arith.maxsi %1, %c0_i32 : i32
    %c0_i32_0 = arith.constant 0 : i32
    %c0_i32_1 = arith.constant 0 : i32
    %c0_i32_2 = arith.constant 0 : i32
    return %arg0, %2, %c0_i32_0, %c0_i32_1 : i32, i32, i32, i32
  }
  func.func @transform_2(%arg0: i32, %arg1: i32) -> (i32, i32, i32, i32) {
    %c8_i32 = arith.constant 8 : i32
    %0 = arith.muli %arg1, %c8_i32 : i32
    %c8_i32_0 = arith.constant 8 : i32
    %1 = arith.addi %0, %c8_i32_0 : i32
    %c15_i32 = arith.constant 15 : i32
    %2 = arith.minsi %1, %c15_i32 : i32
    %c0_i32 = arith.constant 0 : i32
    %c0_i32_1 = arith.constant 0 : i32
    %c0_i32_2 = arith.constant 0 : i32
    return %arg0, %2, %c0_i32, %c0_i32_1 : i32, i32, i32, i32
  }
  func.func @transform_3(%arg0: i32, %arg1: i32) -> (i32, i32, i32, i32) {
    %c0_i32 = arith.constant 0 : i32
    %c0_i32_0 = arith.constant 0 : i32
    %c0_i32_1 = arith.constant 0 : i32
    return %arg0, %arg1, %c0_i32, %c0_i32_0 : i32, i32, i32, i32
  }
  func.func @transform_4(%arg0: i32, %arg1: i32) -> (i32, i32) {
    %c0_i32 = arith.constant 0 : i32
    %c0_i32_0 = arith.constant 0 : i32
    %c0_i32_1 = arith.constant 0 : i32
    return %c0_i32, %c0_i32_0 : i32, i32
  }
  func.func @transform_5(%arg0: i32, %arg1: i32) -> (i32, i32) {
    %c0_i32 = arith.constant 0 : i32
    %c0_i32_0 = arith.constant 0 : i32
    %c0_i32_1 = arith.constant 0 : i32
    return %c0_i32, %c0_i32_0 : i32, i32
  }
  func.func @transform_6(%arg0: i32, %arg1: i32) -> (i32, i32) {
    %c0_i32 = arith.constant 0 : i32
    %c0_i32_0 = arith.constant 0 : i32
    %c0_i32_1 = arith.constant 0 : i32
    return %c0_i32, %c0_i32_0 : i32, i32
  }
  func.func @transform_7(%arg0: i32, %arg1: i32) -> (i32, i32, i32, i32) {
    %c0_i32 = arith.constant 0 : i32
    %c0_i32_0 = arith.constant 0 : i32
    %c0_i32_1 = arith.constant 0 : i32
    return %arg0, %arg1, %c0_i32, %c0_i32_0 : i32, i32, i32, i32
  }
}

</mosaic_0001>

<llo_original>
// kernel: bottleneck_forward.3
$region0: #{bottleneck_forward.3}
  #allocation0 [shape = 'u32[]', space=smem, size = 0x4, offset = 0x4, fixed_abs, tag = 'smem constant byte address 0x4 - core index']
  #allocation1 [shape = 'u32[144,128]{1,0:T(1,128)}', space=vmem, size = 0x12000, scoped, tag = 'internal scratch']
  %s0 = inlined_call_operand.vmem [shape: f32[512,4], index: 0, kind: input, shape index: {}]
  %s1 = inlined_call_operand.vmem [shape: f32[4,2,4], index: 1, kind: output, shape index: {}]
  %s2 = sld [smem:[#allocation0]]
  $region37: #{bottleneck_forward.3} parent=0
    _
  %s4 = ssub.s32 1, %s2
  %s5 = scalar_select 0, %s4, %s2
  loop: start=0, step=1, limit=6
  $region2: #{bottleneck_forward.3} parent=0 // loop_pre_header
    _
  $region3: #{bottleneck_forward.3} parent=0 // loop_header
    %s7 = sphi 0, %s11
    %p8 = scmp.ge.s32.totalorder %s7, 6
    %s17 = sphi 0, %s19
    %s20 = sphi 0, %s17
    %s21 = sphi 0, %s20
    %s37 = sphi 0, %s21
    %s43 = sphi 0, %s45
    %s46 = sphi 0, %s43
    %s47 = sphi 0, %s46
    %s63 = sphi 0, %s47
  $region4: #{bottleneck_forward.3} parent=0 // loop_header_branch
    %10 = sbr.rel (%p8) target = $region8
  $region5: #{bottleneck_forward.3} parent=0 // loop_body
    %s12 = ssub.s32 %s7, 1
    %s13 = ssub.s32 %s7, 2
    %s14 = sadd.s32 %s7, 1
    %s15 = ssub.s32 %s7, %s14
    %p16 = scmp.eq.s32.totalorder %s15, 0
    %s18 = sadd.s32 %s17, 1
    %s19 = scalar_select %p16, %s17, %s18
    %p22 = pneg %p16
    %p23 = scmp.eq.s32.totalorder %s7, 3
    %p24 = por %p22, %p23
    %p25 = scmp.ne.s32.totalorder %s17, %s20
    %p26 = scmp.eq.s32.totalorder %s7, 0
    %p27 = por %p25, %p26
    %p28 = scmp.ne.s32.totalorder %s17, %s20
    %p29 = scmp.eq.s32.totalorder %s12, 3
    %p30 = por %p28, %p29
    %p31 = scmp.ne.s32.totalorder %s20, %s21
    %p32 = scmp.eq.s32.totalorder %s12, 0
    %p33 = por %p31, %p32
    %p34 = scmp.ne.s32.totalorder %s20, %s21
    %p35 = scmp.eq.s32.totalorder %s13, 3
    %p36 = por %p34, %p35
    %p38 = scmp.ne.s32.totalorder %s21, %s37
    %p39 = scmp.eq.s32.totalorder %s13, 0
    %p40 = por %p38, %p39
    %s41 = ssub.s32 %s7, %s14
    %p42 = scmp.eq.s32.totalorder %s41, 0
    %s44 = sadd.s32 %s43, 1
    %s45 = scalar_select %p42, %s43, %s44
    %p48 = pneg %p42
    %p49 = scmp.eq.s32.totalorder %s7, 3
    %p50 = por %p48, %p49
    %p51 = scmp.ne.s32.totalorder %s43, %s46
    %p52 = scmp.eq.s32.totalorder %s7, 0
    %p53 = por %p51, %p52
    %p54 = scmp.ne.s32.totalorder %s43, %s46
    %p55 = scmp.eq.s32.totalorder %s12, 3
    %p56 = por %p54, %p55
    %p57 = scmp.ne.s32.totalorder %s46, %s47
    %p58 = scmp.eq.s32.totalorder %s12, 0
    %p59 = por %p57, %p58
    %p60 = scmp.ne.s32.totalorder %s46, %s47
    %p61 = scmp.eq.s32.totalorder %s13, 3
    %p62 = por %p60, %p61
    %p64 = scmp.ne.s32.totalorder %s47, %s63
    %p65 = scmp.eq.s32.totalorder %s13, 0
    %p66 = por %p64, %p65
    %p67 = scmp.le.s32.totalorder 1, %s7
    %p68 = scmp.lt.s32.totalorder %s7, 5
    %p69 = pnand %p67, %p68
    %p70 = pneg %p69
    // Predicated region
    $region9: #{bottleneck_forward.3} parent=5 // pred_check
      _
    $region10: #{bottleneck_forward.3} parent=5 // pred_check_branch
      %72 = sbr.rel (%p69) target = $region12
    $region11: #{bottleneck_forward.3} parent=5 // pred_region
      %s73 = ssub.s32 %s7, 1
    $region12: #{bottleneck_forward.3} parent=5 // pred_fallthru
      _
    %p74 = scmp.lt.s32.totalorder %s7, 4
    // Predicated region
    $region13: #{bottleneck_forward.3} parent=5 // pred_check
      %p75 = pneg %p74
    $region14: #{bottleneck_forward.3} parent=5 // pred_check_branch
      %77 = sbr.rel (%p75) target = $region16
    $region15: #{bottleneck_forward.3} parent=5 // pred_region
      // Predicated region
      $region17: #{bottleneck_forward.3} parent=15 // pred_check
        %p78 = pneg %p27
      $region18: #{bottleneck_forward.3} parent=15 // pred_check_branch
        %80 = sbr.rel (%p78) target = $region20
      $region19: #{bottleneck_forward.3} parent=15 // pred_region
        %s81 = smul.u32 16, %s7
        %p82 = scmp.lt.s32.totalorder %s81, 63
        %s83 = scalar_select %p82, %s81, 63
        %s84 = smul.addr %s83, 8
        %s85 = scalar_lea.vmem %s0, %s84
        %s86 = smul.u32 16, %s7
      $region20: #{bottleneck_forward.3} parent=15 // pred_fallthru
        _
    $region16: #{bottleneck_forward.3} parent=5 // pred_fallthru
      _
    %p87 = scmp.le.s32.totalorder 1, %s7
    %p88 = scmp.lt.s32.totalorder %s7, 5
    %p89 = pnand %p87, %p88
    %p90 = pneg %p89
    // Predicated region
    $region21: #{bottleneck_forward.3} parent=5 // pred_check
      _
    $region22: #{bottleneck_forward.3} parent=5 // pred_check_branch
      %92 = sbr.rel (%p89) target = $region24
    $region23: #{bottleneck_forward.3} parent=5 // pred_region
      %s93 = ssub.s32 %s7, 1
      %s94 = smul.u32 16, %s12
      %p95 = scmp.lt.s32.totalorder %s94, 63
      %s96 = scalar_select %p95, %s94, 63
      %s97 = smul.addr %s96, 8
      %s98 = scalar_lea.vmem %s0, %s97
      %p99 = pneg %p33
      %p100 = pneg %p30
      %p101 = pneg %p59
      %p102 = pneg %p56
      %p103 = scmp.lt.s32.totalorder %s12, 3
      %s104 = scalar_select %p103, %s12, 3
      %s105 = smul.addr %s104, 2
      %s106 = scalar_lea.vmem %s1, %s105
      %s107 = smul.u32 16, %s12
      %p108 = scmp.lt.s32.totalorder %s107, 63
      %s109 = scalar_select %p108, %s107, 63
      %s110 = smul.addr %s109, 8
      %s111 = scalar_lea.vmem %s0, %s110
      %s112 = smul.u32 16, %s12
      %p113 = scmp.lt.s32.totalorder %s12, 3
      %s114 = scalar_select %p113, %s12, 3
      %s115 = smul.addr %s114, 2
      %s116 = scalar_lea.vmem %s1, %s115
      %v117 = vld [vmem:[%s111] sm:$0xff]
      %v118 = vld [vmem:[%s111 + $0x8] sm:$0xff]
      %v119 = vld [vmem:[%s111 + $0x10] sm:$0xff]
      %v120 = vld [vmem:[%s111 + $0x18] sm:$0xff]
      %v121 = vld [vmem:[%s111 + $0x20] sm:$0xff]
      %v122 = vld [vmem:[%s111 + $0x28] sm:$0xff]
      %v123 = vld [vmem:[%s111 + $0x30] sm:$0xff]
      %v124 = vld [vmem:[%s111 + $0x38] sm:$0xff]
      %v125 = vld [vmem:[%s111 + $0x40] sm:$0xff]
      %v126 = vld [vmem:[%s111 + $0x48] sm:$0xff]
      %v127 = vld [vmem:[%s111 + $0x50] sm:$0xff]
      %v128 = vld [vmem:[%s111 + $0x58] sm:$0xff]
      %v129 = vld [vmem:[%s111 + $0x60] sm:$0xff]
      %v130 = vld [vmem:[%s111 + $0x68] sm:$0xff]
      %v131 = vld [vmem:[%s111 + $0x70] sm:$0xff]
      %v132 = vld [vmem:[%s111 + $0x78] sm:$0xff]
      %vm133 = vcmask 31744
      %v134 = vsel %vm133, %v117, 0.0
      %v135 = vsel %vm133, %v118, 0.0
      %v136 = vadd.f32 %v134, %v135
      %v137 = vsel %vm133, %v119, 0.0
      %v138 = vadd.f32 %v136, %v137
      %v139 = vsel %vm133, %v120, 0.0
      %v140 = vadd.f32 %v138, %v139
      %v141 = vsel %vm133, %v121, 0.0
      %v142 = vadd.f32 %v140, %v141
      %v143 = vsel %vm133, %v122, 0.0
      %v144 = vadd.f32 %v142, %v143
      %v145 = vsel %vm133, %v123, 0.0
      %v146 = vadd.f32 %v144, %v145
      %v147 = vsel %vm133, %v124, 0.0
      %v148 = vadd.f32 %v146, %v147
      %v149 = vsel %vm133, %v125, 0.0
      %v150 = vadd.f32 %v148, %v149
      %v151 = vsel %vm133, %v126, 0.0
      %v152 = vadd.f32 %v150, %v151
      %v153 = vsel %vm133, %v127, 0.0
      %v154 = vadd.f32 %v152, %v153
      %v155 = vsel %vm133, %v128, 0.0
      %v156 = vadd.f32 %v154, %v155
      %v157 = vsel %vm133, %v129, 0.0
      %v158 = vadd.f32 %v156, %v157
      %v159 = vsel %vm133, %v130, 0.0
      %v160 = vadd.f32 %v158, %v159
      %v161 = vsel %vm133, %v131, 0.0
      %v162 = vadd.f32 %v160, %v161
      %v163 = vsel %vm133, %v132, 0.0
      %v164 = vadd.f32 %v162, %v163
      %v165 = vrot.slane %v164, 4
      %v166 = vadd.f32 %v164, %v165
      %v167 = vrot.slane %v166, 2
      %v168 = vadd.f32 %v166, %v167
      %v169 = vrot.slane %v168, 1
      %v170 = vadd.f32 %v168, %v169
      %vm171 = vcmask 24576
      %172 = vst.msk [vmem:[%s116] sm:$0x1] %vm171, %v170
      %v173 = vmul.f32 %v117, %v117
      %v174 = vmul.f32 %v118, %v118
      %v175 = vmul.f32 %v119, %v119
      %v176 = vmul.f32 %v120, %v120
      %v177 = vmul.f32 %v121, %v121
      %v178 = vmul.f32 %v122, %v122
      %v179 = vmul.f32 %v123, %v123
      %v180 = vmul.f32 %v124, %v124
      %v181 = vmul.f32 %v125, %v125
      %v182 = vmul.f32 %v126, %v126
      %v183 = vmul.f32 %v127, %v127
      %v184 = vmul.f32 %v128, %v128
      %v185 = vmul.f32 %v129, %v129
      %v186 = vmul.f32 %v130, %v130
      %v187 = vmul.f32 %v131, %v131
      %v188 = vmul.f32 %v132, %v132
      %v189 = vsel %vm133, %v173, 0.0
      %v190 = vsel %vm133, %v174, 0.0
      %v191 = vadd.f32 %v189, %v190
      %v192 = vsel %vm133, %v175, 0.0
      %v193 = vadd.f32 %v191, %v192
      %v194 = vsel %vm133, %v176, 0.0
      %v195 = vadd.f32 %v193, %v194
      %v196 = vsel %vm133, %v177, 0.0
      %v197 = vadd.f32 %v195, %v196
      %v198 = vsel %vm133, %v178, 0.0
      %v199 = vadd.f32 %v197, %v198
      %v200 = vsel %vm133, %v179, 0.0
      %v201 = vadd.f32 %v199, %v200
      %v202 = vsel %vm133, %v180, 0.0
      %v203 = vadd.f32 %v201, %v202
      %v204 = vsel %vm133, %v181, 0.0
      %v205 = vadd.f32 %v203, %v204
      %v206 = vsel %vm133, %v182, 0.0
      %v207 = vadd.f32 %v205, %v206
      %v208 = vsel %vm133, %v183, 0.0
      %v209 = vadd.f32 %v207, %v208
      %v210 = vsel %vm133, %v184, 0.0
      %v211 = vadd.f32 %v209, %v210
      %v212 = vsel %vm133, %v185, 0.0
      %v213 = vadd.f32 %v211, %v212
      %v214 = vsel %vm133, %v186, 0.0
      %v215 = vadd.f32 %v213, %v214
      %v216 = vsel %vm133, %v187, 0.0
      %v217 = vadd.f32 %v215, %v216
      %v218 = vsel %vm133, %v188, 0.0
      %v219 = vadd.f32 %v217, %v218
      %v220 = vrot.slane %v219, 4
      %v221 = vadd.f32 %v219, %v220
      %v222 = vrot.slane %v221, 2
      %v223 = vadd.f32 %v221, %v222
      %v224 = vrot.slane %v223, 1
      %v225 = vadd.f32 %v223, %v224
      %226 = vst.msk [vmem:[%s116 + $0x1] sm:$0x1] %vm171, %v225
      %p227 = scmp.lt.s32.totalorder %s12, 3
      %s228 = scalar_select %p227, %s12, 3
      %s229 = smul.addr %s228, 2
      %s230 = scalar_lea.vmem %s1, %s229
      // Predicated region
      $region25: #{bottleneck_forward.3} parent=23 // pred_check
        %p231 = pneg %p56
      $region26: #{bottleneck_forward.3} parent=23 // pred_check_branch
        %233 = sbr.rel (%p231) target = $region28
      $region27: #{bottleneck_forward.3} parent=23 // pred_region
        _
      $region28: #{bottleneck_forward.3} parent=23 // pred_fallthru
        _
    $region24: #{bottleneck_forward.3} parent=5 // pred_fallthru
      _
    %p234 = scmp.le.s32.totalorder 2, %s7
    // Predicated region
    $region29: #{bottleneck_forward.3} parent=5 // pred_check
      %p235 = pneg %p234
    $region30: #{bottleneck_forward.3} parent=5 // pred_check_branch
      %237 = sbr.rel (%p235) target = $region32
    $region31: #{bottleneck_forward.3} parent=5 // pred_region
      %s238 = ssub.s32 %s7, 2
      // Predicated region
      $region33: #{bottleneck_forward.3} parent=31 // pred_check
        %p239 = pneg %p62
      $region34: #{bottleneck_forward.3} parent=31 // pred_check_branch
        %241 = sbr.rel (%p239) target = $region36
      $region35: #{bottleneck_forward.3} parent=31 // pred_region
        %p242 = scmp.lt.s32.totalorder %s13, 3
        %s243 = scalar_select %p242, %s13, 3
        %s244 = smul.addr %s243, 2
        %s245 = scalar_lea.vmem %s1, %s244
      $region36: #{bottleneck_forward.3} parent=31 // pred_fallthru
        _
    $region32: #{bottleneck_forward.3} parent=5 // pred_fallthru
      _
  $region6: #{bottleneck_forward.3} parent=0 // loop_footer
    %s11 = sadd.s32 1, %s7
  $region7: #{bottleneck_forward.3} parent=0 // loop_footer_branch
    %6 = sbr.rel target = $region3
  $region8: #{bottleneck_forward.3} parent=0 // loop_exit
    _

// kernel: bottleneck_forward.4
$region0: #{bottleneck_forward.4}
  #allocation0 [shape = 'u32[]', space=smem, size = 0x4, offset = 0x4, fixed_abs, tag = 'smem constant byte address 0x4 - core index']
  #allocation1 [shape = 'u32[144,128]{1,0:T(1,128)}', space=vmem, size = 0x12000, scoped, tag = 'internal scratch']
  %s0 = inlined_call_operand.vmem [shape: f32[512,4], index: 0, kind: input, shape index: {}]
  %s1 = inlined_call_operand.vmem [shape: f32[1,4], index: 1, kind: input, shape index: {}]
  %s2 = inlined_call_operand.vmem [shape: f32[1,4], index: 2, kind: input, shape index: {}]
  %s3 = inlined_call_operand.vmem [shape: bf16[4,16], index: 3, kind: input, shape index: {}]
  %s4 = inlined_call_operand.hbm [shape: bf16[512,16], index: 4, kind: output, shape index: {0}]
  %s5 = inlined_call_operand.vmem [shape: f32[4,2,16], index: 5, kind: output, shape index: {1}]
  %6 = xla_tuple %s4, %s5
  %s7 = sld [smem:[#allocation0]]
  $region57: #{bottleneck_forward.4} parent=0
    _
  %s9 = ssub.s32 1, %s7
  %s10 = scalar_select 0, %s9, %s7
  $region1: #{bottleneck_forward.4} parent=0
    #allocation2 [shape = 'u8[65536]{0}', space=vmem, size = 0x10000, scoped, tag = 'output window, operand 0']
    #allocation3 [shape = 's32[2]{0}', space=sflag, size = 0x8, scoped, tag = 'scoped memory for bottleneck_forward.4']
    %11 = vsyncpa [#allocation3], 0
    %s12 = scalar_lea.sflag [#allocation3], 1
    %13 = vsyncpa %s12, 0
    loop: start=0, step=1, limit=6
    $region2: #{bottleneck_forward.4} parent=1 // loop_pre_header
      _
    $region3: #{bottleneck_forward.4} parent=1 // loop_header
      %s15 = sphi 0, %s19
      %p16 = scmp.ge.s32.totalorder %s15, 6
      %s25 = sphi 0, %s27
      %s28 = sphi 0, %s25
      %s29 = sphi 0, %s28
      %s45 = sphi 0, %s29
      %s49 = sphi 0, %s49
      %s51 = sphi 0, %s49
      %s52 = sphi 0, %s51
      %s66 = sphi 0, %s52
      %s70 = sphi 0, %s70
      %s72 = sphi 0, %s70
      %s73 = sphi 0, %s72
      %s87 = sphi 0, %s73
      %s91 = sphi 0, %s91
      %s93 = sphi 0, %s91
      %s94 = sphi 0, %s93
      %s108 = sphi 0, %s94
      %s114 = sphi 0, %s116
      %s117 = sphi 0, %s114
      %s118 = sphi 0, %s117
      %s134 = sphi 0, %s118
      %s140 = sphi 0, %s142
      %s143 = sphi 0, %s140
      %s144 = sphi 0, %s143
      %s160 = sphi 0, %s144
    $region4: #{bottleneck_forward.4} parent=1 // loop_header_branch
      %18 = sbr.rel (%p16) target = $region8
    $region5: #{bottleneck_forward.4} parent=1 // loop_body
      %s20 = ssub.s32 %s15, 1
      %s21 = ssub.s32 %s15, 2
      %s22 = sadd.s32 %s15, 1
      %s23 = ssub.s32 %s15, %s22
      %p24 = scmp.eq.s32.totalorder %s23, 0
      %s26 = sadd.s32 %s25, 1
      %s27 = scalar_select %p24, %s25, %s26
      %p30 = pneg %p24
      %p31 = scmp.eq.s32.totalorder %s15, 3
      %p32 = por %p30, %p31
      %p33 = scmp.ne.s32.totalorder %s25, %s28
      %p34 = scmp.eq.s32.totalorder %s15, 0
      %p35 = por %p33, %p34
      %p36 = scmp.ne.s32.totalorder %s25, %s28
      %p37 = scmp.eq.s32.totalorder %s20, 3
      %p38 = por %p36, %p37
      %p39 = scmp.ne.s32.totalorder %s28, %s29
      %p40 = scmp.eq.s32.totalorder %s20, 0
      %p41 = por %p39, %p40
      %p42 = scmp.ne.s32.totalorder %s28, %s29
      %p43 = scmp.eq.s32.totalorder %s21, 3
      %p44 = por %p42, %p43
      %p46 = scmp.ne.s32.totalorder %s29, %s45
      %p47 = scmp.eq.s32.totalorder %s21, 0
      %p48 = por %p46, %p47
      %s50 = sadd.s32 %s49, 1
      %p53 = scmp.eq.s32.totalorder %s15, 3
      %p54 = scmp.ne.s32.totalorder %s49, %s51
      %p55 = scmp.eq.s32.totalorder %s15, 0
      %p56 = por %p54, %p55
      %p57 = scmp.ne.s32.totalorder %s49, %s51
      %p58 = scmp.eq.s32.totalorder %s20, 3
      %p59 = por %p57, %p58
      %p60 = scmp.ne.s32.totalorder %s51, %s52
      %p61 = scmp.eq.s32.totalorder %s20, 0
      %p62 = por %p60, %p61
      %p63 = scmp.ne.s32.totalorder %s51, %s52
      %p64 = scmp.eq.s32.totalorder %s21, 3
      %p65 = por %p63, %p64
      %p67 = scmp.ne.s32.totalorder %s52, %s66
      %p68 = scmp.eq.s32.totalorder %s21, 0
      %p69 = por %p67, %p68
      %s71 = sadd.s32 %s70, 1
      %p74 = scmp.eq.s32.totalorder %s15, 3
      %p75 = scmp.ne.s32.totalorder %s70, %s72
      %p76 = scmp.eq.s32.totalorder %s15, 0
      %p77 = por %p75, %p76
      %p78 = scmp.ne.s32.totalorder %s70, %s72
      %p79 = scmp.eq.s32.totalorder %s20, 3
      %p80 = por %p78, %p79
      %p81 = scmp.ne.s32.totalorder %s72, %s73
      %p82 = scmp.eq.s32.totalorder %s20, 0
      %p83 = por %p81, %p82
      %p84 = scmp.ne.s32.totalorder %s72, %s73
      %p85 = scmp.eq.s32.totalorder %s21, 3
      %p86 = por %p84, %p85
      %p88 = scmp.ne.s32.totalorder %s73, %s87
      %p89 = scmp.eq.s32.totalorder %s21, 0
      %p90 = por %p88, %p89
      %s92 = sadd.s32 %s91, 1
      %p95 = scmp.eq.s32.totalorder %s15, 3
      %p96 = scmp.ne.s32.totalorder %s91, %s93
      %p97 = scmp.eq.s32.totalorder %s15, 0
      %p98 = por %p96, %p97
      %p99 = scmp.ne.s32.totalorder %s91, %s93
      %p100 = scmp.eq.s32.totalorder %s20, 3
      %p101 = por %p99, %p100
      %p102 = scmp.ne.s32.totalorder %s93, %s94
      %p103 = scmp.eq.s32.totalorder %s20, 0
      %p104 = por %p102, %p103
      %p105 = scmp.ne.s32.totalorder %s93, %s94
      %p106 = scmp.eq.s32.totalorder %s21, 3
      %p107 = por %p105, %p106
      %p109 = scmp.ne.s32.totalorder %s94, %s108
      %p110 = scmp.eq.s32.totalorder %s21, 0
      %p111 = por %p109, %p110
      %s112 = ssub.s32 %s15, %s22
      %p113 = scmp.eq.s32.totalorder %s112, 0
      %s115 = sadd.s32 %s114, 1
      %s116 = scalar_select %p113, %s114, %s115
      %p119 = pneg %p113
      %p120 = scmp.eq.s32.totalorder %s15, 3
      %p121 = por %p119, %p120
      %p122 = scmp.ne.s32.totalorder %s114, %s117
      %p123 = scmp.eq.s32.totalorder %s15, 0
      %p124 = por %p122, %p123
      %p125 = scmp.ne.s32.totalorder %s114, %s117
      %p126 = scmp.eq.s32.totalorder %s20, 3
      %p127 = por %p125, %p126
      %p128 = scmp.ne.s32.totalorder %s117, %s118
      %p129 = scmp.eq.s32.totalorder %s20, 0
      %p130 = por %p128, %p129
      %p131 = scmp.ne.s32.totalorder %s117, %s118
      %p132 = scmp.eq.s32.totalorder %s21, 3
      %p133 = por %p131, %p132
      %p135 = scmp.ne.s32.totalorder %s118, %s134
      %p136 = scmp.eq.s32.totalorder %s21, 0
      %p137 = por %p135, %p136
      %s138 = ssub.s32 %s15, %s22
      %p139 = scmp.eq.s32.totalorder %s138, 0
      %s141 = sadd.s32 %s140, 1
      %s142 = scalar_select %p139, %s140, %s141
      %p145 = pneg %p139
      %p146 = scmp.eq.s32.totalorder %s15, 3
      %p147 = por %p145, %p146
      %p148 = scmp.ne.s32.totalorder %s140, %s143
      %p149 = scmp.eq.s32.totalorder %s15, 0
      %p150 = por %p148, %p149
      %p151 = scmp.ne.s32.totalorder %s140, %s143
      %p152 = scmp.eq.s32.totalorder %s20, 3
      %p153 = por %p151, %p152
      %p154 = scmp.ne.s32.totalorder %s143, %s144
      %p155 = scmp.eq.s32.totalorder %s20, 0
      %p156 = por %p154, %p155
      %p157 = scmp.ne.s32.totalorder %s143, %s144
      %p158 = scmp.eq.s32.totalorder %s21, 3
      %p159 = por %p157, %p158
      %p161 = scmp.ne.s32.totalorder %s144, %s160
      %p162 = scmp.eq.s32.totalorder %s21, 0
      %p163 = por %p161, %p162
      %p164 = scmp.le.s32.totalorder 1, %s15
      %p165 = scmp.lt.s32.totalorder %s15, 5
      %p166 = pnand %p164, %p165
      %p167 = pneg %p166
      // Predicated region
      $region9: #{bottleneck_forward.4} parent=5 // pred_check
        _
      $region10: #{bottleneck_forward.4} parent=5 // pred_check_branch
        %169 = sbr.rel (%p166) target = $region12
      $region11: #{bottleneck_forward.4} parent=5 // pred_region
        %s170 = ssub.s32 %s15, 1
        // Predicated region
        $region13: #{bottleneck_forward.4} parent=11 // pred_check
          %p171 = pneg %p62
        $region14: #{bottleneck_forward.4} parent=11 // pred_check_branch
          %173 = sbr.rel (%p171) target = $region16
        $region15: #{bottleneck_forward.4} parent=11 // pred_region
          _
        $region16: #{bottleneck_forward.4} parent=11 // pred_fallthru
          _
        // Predicated region
        $region17: #{bottleneck_forward.4} parent=11 // pred_check
          %p174 = pneg %p83
        $region18: #{bottleneck_forward.4} parent=11 // pred_check_branch
          %176 = sbr.rel (%p174) target = $region20
        $region19: #{bottleneck_forward.4} parent=11 // pred_region
          _
        $region20: #{bottleneck_forward.4} parent=11 // pred_fallthru
          _
        // Predicated region
        $region21: #{bottleneck_forward.4} parent=11 // pred_check
          %p177 = pneg %p104
        $region22: #{bottleneck_forward.4} parent=11 // pred_check_branch
          %179 = sbr.rel (%p177) target = $region24
        $region23: #{bottleneck_forward.4} parent=11 // pred_region
          _
        $region24: #{bottleneck_forward.4} parent=11 // pred_fallthru
          _
      $region12: #{bottleneck_forward.4} parent=5 // pred_fallthru
        _
      %p180 = scmp.lt.s32.totalorder %s15, 4
      // Predicated region
      $region25: #{bottleneck_forward.4} parent=5 // pred_check
        %p181 = pneg %p180
      $region26: #{bottleneck_forward.4} parent=5 // pred_check_branch
        %183 = sbr.rel (%p181) target = $region28
      $region27: #{bottleneck_forward.4} parent=5 // pred_region
        // Predicated region
        $region29: #{bottleneck_forward.4} parent=27 // pred_check
          %p184 = pneg %p35
        $region30: #{bottleneck_forward.4} parent=27 // pred_check_branch
          %186 = sbr.rel (%p184) target = $region32
        $region31: #{bottleneck_forward.4} parent=27 // pred_region
          %s187 = smul.u32 16, %s15
          %p188 = scmp.lt.s32.totalorder %s187, 63
          %s189 = scalar_select %p188, %s187, 63
          %s190 = smul.addr %s189, 8
          %s191 = scalar_lea.vmem %s0, %s190
          %s192 = smul.u32 16, %s15
        $region32: #{bottleneck_forward.4} parent=27 // pred_fallthru
          _
      $region28: #{bottleneck_forward.4} parent=5 // pred_fallthru
        _
      %p193 = scmp.le.s32.totalorder 1, %s15
      %p194 = scmp.lt.s32.totalorder %s15, 5
      %p195 = pnand %p193, %p194
      %p196 = pneg %p195
      // Predicated region
      $region33: #{bottleneck_forward.4} parent=5 // pred_check
        _
      $region34: #{bottleneck_forward.4} parent=5 // pred_check_branch
        %198 = sbr.rel (%p195) target = $region36
      $region35: #{bottleneck_forward.4} parent=5 // pred_region
        %s199 = ssub.s32 %s15, 1
        %s200 = smul.u32 16, %s20
        %p201 = scmp.lt.s32.totalorder %s200, 63
        %s202 = scalar_select %p201, %s200, 63
        %s203 = smul.addr %s202, 8
        %s204 = scalar_lea.vmem %s0, %s203
        %p205 = pneg %p41
        %p206 = pneg %p38
        %p207 = pneg %p62
        %p208 = pneg %p59
        %p209 = pneg %p83
        %p210 = pneg %p80
        %p211 = pneg %p104
        %p212 = pneg %p101
        %p213 = pneg %p130
        %p214 = pneg %p127
        %s215 = sand.u32 %s117, 1
        %s216 = scalar_lea.sflag [#allocation3], %s215
        %s217 = sand.u32 %s117, 1
        %s218 = smul.addr %s217, 64
        %s219 = scalar_lea.vmem [#allocation2], %s218
        %p220 = pneg %p156
        %p221 = pneg %p153
        %p222 = scmp.lt.s32.totalorder %s20, 3
        %s223 = scalar_select %p222, %s20, 3
        %s224 = smul.addr %s223, 2
        %s225 = scalar_lea.vmem %s5, %s224
        %s226 = smul.u32 16, %s20
        %p227 = scmp.lt.s32.totalorder %s226, 63
        %s228 = scalar_select %p227, %s226, 63
        %s229 = smul.addr %s228, 8
        %s230 = scalar_lea.vmem %s0, %s229
        %s231 = smul.u32 16, %s20
        %s232 = smul.u32 16, %s20
        %p233 = scmp.lt.s32.totalorder %s20, 3
        %s234 = scalar_select %p233, %s20, 3
        %s235 = smul.addr %s234, 2
        %s236 = scalar_lea.vmem %s5, %s235
        %v238 = vld [vmem:[%s230] sm:$0xff]
        %v239 = vld [vmem:[%s230 + $0x8] sm:$0xff]
        %v240 = vld [vmem:[%s230 + $0x10] sm:$0xff]
        %v241 = vld [vmem:[%s230 + $0x18] sm:$0xff]
        %v242 = vld [vmem:[%s230 + $0x20] sm:$0xff]
        %v243 = vld [vmem:[%s230 + $0x28] sm:$0xff]
        %v244 = vld [vmem:[%s230 + $0x30] sm:$0xff]
        %v245 = vld [vmem:[%s230 + $0x38] sm:$0xff]
        %v246 = vld [vmem:[%s230 + $0x40] sm:$0xff]
        %v247 = vld [vmem:[%s230 + $0x48] sm:$0xff]
        %v248 = vld [vmem:[%s230 + $0x50] sm:$0xff]
        %v249 = vld [vmem:[%s230 + $0x58] sm:$0xff]
        %v250 = vld [vmem:[%s230 + $0x60] sm:$0xff]
        %v251 = vld [vmem:[%s230 + $0x68] sm:$0xff]
        %v252 = vld [vmem:[%s230 + $0x70] sm:$0xff]
        %v253 = vld [vmem:[%s230 + $0x78] sm:$0xff]
        %v254 = vld [vmem:[%s1] sm:$0x1]
        %v256 = vlaneseq
        %v257 = vshrl.u32 %v256, 7
        %v258 = vsub.s32 0, %v257
        %v259 = vrot.slane %v254, %v258
        %v261 = vmul.f32 %v238, %v259
        %v262 = vmul.f32 %v239, %v259
        %v263 = vmul.f32 %v240, %v259
        %v264 = vmul.f32 %v241, %v259
        %v265 = vmul.f32 %v242, %v259
        %v266 = vmul.f32 %v243, %v259
        %v267 = vmul.f32 %v244, %v259
        %v268 = vmul.f32 %v245, %v259
        %v269 = vmul.f32 %v246, %v259
        %v270 = vmul.f32 %v247, %v259
        %v271 = vmul.f32 %v248, %v259
        %v272 = vmul.f32 %v249, %v259
        %v273 = vmul.f32 %v250, %v259
        %v274 = vmul.f32 %v251, %v259
        %v275 = vmul.f32 %v252, %v259
        %v276 = vmul.f32 %v253, %v259
        %v277 = vld [vmem:[%s2] sm:$0x1]
        %v279 = vlaneseq
        %v280 = vshrl.u32 %v279, 7
        %v281 = vsub.s32 0, %v280
        %v282 = vrot.slane %v277, %v281
        %v284 = vadd.f32 %v261, %v282
        %v285 = vadd.f32 %v262, %v282
        %v286 = vadd.f32 %v263, %v282
        %v287 = vadd.f32 %v264, %v282
        %v288 = vadd.f32 %v265, %v282
        %v289 = vadd.f32 %v266, %v282
        %v290 = vadd.f32 %v267, %v282
        %v291 = vadd.f32 %v268, %v282
        %v292 = vadd.f32 %v269, %v282
        %v293 = vadd.f32 %v270, %v282
        %v294 = vadd.f32 %v271, %v282
        %v295 = vadd.f32 %v272, %v282
        %v296 = vadd.f32 %v273, %v282
        %v297 = vadd.f32 %v274, %v282
        %v298 = vadd.f32 %v275, %v282
        %v299 = vadd.f32 %v276, %v282
        %v300 = vmax.f32 %v284, 0.0
        %v301 = vmax.f32 %v285, 0.0
        %v302 = vmax.f32 %v286, 0.0
        %v303 = vmax.f32 %v287, 0.0
        %v304 = vmax.f32 %v288, 0.0
        %v305 = vmax.f32 %v289, 0.0
        %v306 = vmax.f32 %v290, 0.0
        %v307 = vmax.f32 %v291, 0.0
        %v308 = vmax.f32 %v292, 0.0
        %v309 = vmax.f32 %v293, 0.0
        %v310 = vmax.f32 %v294, 0.0
        %v311 = vmax.f32 %v295, 0.0
        %v312 = vmax.f32 %v296, 0.0
        %v313 = vmax.f32 %v297, 0.0
        %v314 = vmax.f32 %v298, 0.0
        %v315 = vmax.f32 %v299, 0.0
        %v316 = vpack.c.bf16 %v301, %v300
        %v317 = vpack.c.bf16 %v303, %v302
        %v318 = vpack.c.bf16 %v305, %v304
        %v319 = vpack.c.bf16 %v307, %v306
        %v320 = vpack.c.bf16 %v309, %v308
        %v321 = vpack.c.bf16 %v311, %v310
        %v322 = vpack.c.bf16 %v313, %v312
        %v323 = vpack.c.bf16 %v315, %v314
        %v324 = vld [vmem:[%s3] sm:$0x3]
        %vm325 = vcmask 31744
        %v327 = vsel %vm325, %v316, 0
        %v330 = vsel %vm325, %v317, 0
        %v333 = vsel %vm325, %v318, 0
        %v336 = vsel %vm325, %v319, 0
        %v339 = vsel %vm325, %v320, 0
        %v342 = vsel %vm325, %v321, 0
        %v345 = vsel %vm325, %v322, 0
        %v348 = vsel %vm325, %v323, 0
        %vm350 = vcmask 1041408
        %v352 = vsel %vm350, %v324, 0
        %354 = vmatprep.subr.bf16.mxu0 0
        %355 = vmatpush1.bf16.msra.mxu0 %v352
        %356 = vmatprep.subr.bf16.mxu0 0
        %357 = vmatpush1.bf16.msra.mxu0 0
        %358 = vmatprep.subr.bf16.mxu0 0
        %359 = vmatpush1.bf16.msra.mxu0 0
        %360 = vmatprep.subr.bf16.mxu0 0
        %361 = vmatpush1.bf16.msra.mxu0 0
        %362 = vmatprep.subr.bf16.mxu0 0
        %363 = vmatpush1.bf16.msra.mxu0 0
        %364 = vmatprep.subr.bf16.mxu0 0
        %365 = vmatpush1.bf16.msra.mxu0 0
        %366 = vmatprep.subr.bf16.mxu0 0
        %367 = vmatpush1.bf16.msra.mxu0 0
        %368 = vmatprep.subr.bf16.mxu0 0
        %369 = vmatpush1.bf16.msra.mxu0 0
        %370 = vmatprep.subr.bf16.mxu0 0
        %371 = vmatpush1.bf16.msra.mxu0 0
        %372 = vmatprep.subr.bf16.mxu0 0
        %373 = vmatpush1.bf16.msra.mxu0 0
        %374 = vmatprep.subr.bf16.mxu0 0
        %375 = vmatpush1.bf16.msra.mxu0 0
        %376 = vmatprep.subr.bf16.mxu0 0
        %377 = vmatpush1.bf16.msra.mxu0 0
        %378 = vmatprep.subr.bf16.mxu0 0
        %379 = vmatpush1.bf16.msra.mxu0 0
        %380 = vmatprep.subr.bf16.mxu0 0
        %381 = vmatpush1.bf16.msra.mxu0 0
        %382 = vmatprep.subr.bf16.mxu0 0
        %383 = vmatpush1.bf16.msra.mxu0 0
        %384 = vmatprep.subr.bf16.mxu0 0
        %385 = vmatpush1.bf16.msra.mxu0 0
        %386 = vmatprep.mubr.bf16.mxu0 0
        %387 = vmatmul.mubr.bf16.gmra.mrb[0].mxu0 %v327
        %v388 = vpop.f32.mrb[0].mxu0
        %v389 = vadd.f32 0.0, %v388
        %v390 = vpop.f32.mrb[0].mxu0
        %v391 = vpop.f32.mrb[0].mxu0
        %v392 = vadd.f32 0.0, %v391
        %v393 = vpop.f32.mrb[0].mxu0
        %394 = vmatprep.mubr.bf16.mxu0 0
        %395 = vmatmul.mubr.bf16.gmra.mrb[0].mxu0 %v330
        %v396 = vpop.f32.mrb[0].mxu0
        %v397 = vadd.f32 0.0, %v396
        %v398 = vpop.f32.mrb[0].mxu0
        %v399 = vpop.f32.mrb[0].mxu0
        %v400 = vadd.f32 0.0, %v399
        %v401 = vpop.f32.mrb[0].mxu0
        %402 = vmatprep.mubr.bf16.mxu0 0
        %403 = vmatmul.mubr.bf16.gmra.mrb[0].mxu0 %v333
        %v404 = vpop.f32.mrb[0].mxu0
        %v405 = vadd.f32 0.0, %v404
        %v406 = vpop.f32.mrb[0].mxu0
        %v407 = vpop.f32.mrb[0].mxu0
        %v408 = vadd.f32 0.0, %v407
        %v409 = vpop.f32.mrb[0].mxu0
        %410 = vmatprep.mubr.bf16.mxu0 0
        %411 = vmatmul.mubr.bf16.gmra.mrb[0].mxu0 %v336
        %v412 = vpop.f32.mrb[0].mxu0
        %v413 = vadd.f32 0.0, %v412
        %v414 = vpop.f32.mrb[0].mxu0
        %v415 = vpop.f32.mrb[0].mxu0
        %v416 = vadd.f32 0.0, %v415
        %v417 = vpop.f32.mrb[0].mxu0
        %418 = vmatprep.mubr.bf16.mxu0 0
        %419 = vmatmul.mubr.bf16.gmra.mrb[0].mxu0 %v339
        %v420 = vpop.f32.mrb[0].mxu0
        %v421 = vadd.f32 0.0, %v420
        %v422 = vpop.f32.mrb[0].mxu0
        %v423 = vpop.f32.mrb[0].mxu0
        %v424 = vadd.f32 0.0, %v423
        %v425 = vpop.f32.mrb[0].mxu0
        %426 = vmatprep.mubr.bf16.mxu0 0
        %427 = vmatmul.mubr.bf16.gmra.mrb[0].mxu0 %v342
        %v428 = vpop.f32.mrb[0].mxu0
        %v429 = vadd.f32 0.0, %v428
        %v430 = vpop.f32.mrb[0].mxu0
        %v431 = vpop.f32.mrb[0].mxu0
        %v432 = vadd.f32 0.0, %v431
        %v433 = vpop.f32.mrb[0].mxu0
        %434 = vmatprep.mubr.bf16.mxu0 0
        %435 = vmatmul.mubr.bf16.gmra.mrb[0].mxu0 %v345
        %v436 = vpop.f32.mrb[0].mxu0
        %v437 = vadd.f32 0.0, %v436
        %v438 = vpop.f32.mrb[0].mxu0
        %v439 = vpop.f32.mrb[0].mxu0
        %v440 = vadd.f32 0.0, %v439
        %v441 = vpop.f32.mrb[0].mxu0
        %442 = vmatprep.mubr.bf16.mxu0 0
        %443 = vmatmul.mubr.bf16.gmra.mrb[0].mxu0 %v348
        %v444 = vpop.f32.mrb[0].mxu0
        %v445 = vadd.f32 0.0, %v444
        %v446 = vpop.f32.mrb[0].mxu0
        %v447 = vpop.f32.mrb[0].mxu0
        %v448 = vadd.f32 0.0, %v447
        %v449 = vpop.f32.mrb[0].mxu0
        %450 = vdwg.mxu0
        %v451 = vpack.c.bf16 %v392, %v389
        %v452 = vpack.c.bf16 %v400, %v397
        %v453 = vpack.c.bf16 %v408, %v405
        %v454 = vpack.c.bf16 %v416, %v413
        %v455 = vpack.c.bf16 %v424, %v421
        %v456 = vpack.c.bf16 %v432, %v429
        %v457 = vpack.c.bf16 %v440, %v437
        %v458 = vpack.c.bf16 %v448, %v445
        %v467 = vunpack.c.l.b16 %v451
        %v468 = vunpack.c.h.b16 %v451
        %v469 = vunpack.c.l.b16 %v452
        %v470 = vunpack.c.h.b16 %v452
        %v471 = vunpack.c.l.b16 %v453
        %v472 = vunpack.c.h.b16 %v453
        %v473 = vunpack.c.l.b16 %v454
        %v474 = vunpack.c.h.b16 %v454
        %v475 = vunpack.c.l.b16 %v455
        %v476 = vunpack.c.h.b16 %v455
        %v477 = vunpack.c.l.b16 %v456
        %v478 = vunpack.c.h.b16 %v456
        %v479 = vunpack.c.l.b16 %v457
        %v480 = vunpack.c.h.b16 %v457
        %v481 = vunpack.c.l.b16 %v458
        %v482 = vunpack.c.h.b16 %v458
        %v483 = vpack.c.b16 %v467, %v467
        %v484 = vpack.c.b16 %v468, %v468
        %v485 = vpack.c.b16 %v469, %v469
        %v486 = vpack.c.b16 %v470, %v470
        %v487 = vpack.c.b16 %v471, %v471
        %v488 = vpack.c.b16 %v472, %v472
        %v489 = vpack.c.b16 %v473, %v473
        %v490 = vpack.c.b16 %v474, %v474
        %v491 = vpack.c.b16 %v475, %v475
        %v492 = vpack.c.b16 %v476, %v476
        %v493 = vpack.c.b16 %v477, %v477
        %v494 = vpack.c.b16 %v478, %v478
        %v495 = vpack.c.b16 %v479, %v479
        %v496 = vpack.c.b16 %v480, %v480
        %v497 = vpack.c.b16 %v481, %v481
        %v498 = vpack.c.b16 %v482, %v482
        %vm515 = vcmask 125952
        %516 = vst.msk [vmem:[%s219] sm:$0xf] %vm515, %v483
        %517 = vst.msk [vmem:[%s219 + $0x4] sm:$0xf] %vm515, %v484
        %518 = vst.msk [vmem:[%s219 + $0x8] sm:$0xf] %vm515, %v485
        %519 = vst.msk [vmem:[%s219 + $0xc] sm:$0xf] %vm515, %v486
        %520 = vst.msk [vmem:[%s219 + $0x10] sm:$0xf] %vm515, %v487
        %521 = vst.msk [vmem:[%s219 + $0x14] sm:$0xf] %vm515, %v488
        %522 = vst.msk [vmem:[%s219 + $0x18] sm:$0xf] %vm515, %v489
        %523 = vst.msk [vmem:[%s219 + $0x1c] sm:$0xf] %vm515, %v490
        %524 = vst.msk [vmem:[%s219 + $0x20] sm:$0xf] %vm515, %v491
        %525 = vst.msk [vmem:[%s219 + $0x24] sm:$0xf] %vm515, %v492
        %526 = vst.msk [vmem:[%s219 + $0x28] sm:$0xf] %vm515, %v493
        %527 = vst.msk [vmem:[%s219 + $0x2c] sm:$0xf] %vm515, %v494
        %528 = vst.msk [vmem:[%s219 + $0x30] sm:$0xf] %vm515, %v495
        %529 = vst.msk [vmem:[%s219 + $0x34] sm:$0xf] %vm515, %v496
        %530 = vst.msk [vmem:[%s219 + $0x38] sm:$0xf] %vm515, %v497
        %531 = vst.msk [vmem:[%s219 + $0x3c] sm:$0xf] %vm515, %v498
        %vm532 = vcmask 130048
        %v533 = vsel %vm532, %v389, 0.0
        %v534 = vsel %vm532, %v392, 0.0
        %v535 = vadd.f32 %v533, %v534
        %v536 = vsel %vm532, %v397, 0.0
        %v537 = vadd.f32 %v535, %v536
        %v538 = vsel %vm532, %v400, 0.0
        %v539 = vadd.f32 %v537, %v538
        %v540 = vsel %vm532, %v405, 0.0
        %v541 = vadd.f32 %v539, %v540
        %v542 = vsel %vm532, %v408, 0.0
        %v543 = vadd.f32 %v541, %v542
        %v544 = vsel %vm532, %v413, 0.0
        %v545 = vadd.f32 %v543, %v544
        %v546 = vsel %vm532, %v416, 0.0
        %v547 = vadd.f32 %v545, %v546
        %v548 = vsel %vm532, %v421, 0.0
        %v549 = vadd.f32 %v547, %v548
        %v550 = vsel %vm532, %v424, 0.0
        %v551 = vadd.f32 %v549, %v550
        %v552 = vsel %vm532, %v429, 0.0
        %v553 = vadd.f32 %v551, %v552
        %v554 = vsel %vm532, %v432, 0.0
        %v555 = vadd.f32 %v553, %v554
        %v556 = vsel %vm532, %v437, 0.0
        %v557 = vadd.f32 %v555, %v556
        %v558 = vsel %vm532, %v440, 0.0
        %v559 = vadd.f32 %v557, %v558
        %v560 = vsel %vm532, %v445, 0.0
        %v561 = vadd.f32 %v559, %v560
        %v562 = vsel %vm532, %v448, 0.0
        %v563 = vadd.f32 %v561, %v562
        %v564 = vrot.slane %v563, 4
        %v565 = vadd.f32 %v563, %v564
        %v566 = vrot.slane %v565, 2
        %v567 = vadd.f32 %v565, %v566
        %v568 = vrot.slane %v567, 1
        %v569 = vadd.f32 %v567, %v568
        %vm570 = vcmask 122880
        %571 = vst.msk [vmem:[%s236] sm:$0x1] %vm570, %v569
        %v572 = vmul.f32 %v389, %v389
        %v573 = vmul.f32 %v392, %v392
        %v574 = vmul.f32 %v397, %v397
        %v575 = vmul.f32 %v400, %v400
        %v576 = vmul.f32 %v405, %v405
        %v577 = vmul.f32 %v408, %v408
        %v578 = vmul.f32 %v413, %v413
        %v579 = vmul.f32 %v416, %v416
        %v580 = vmul.f32 %v421, %v421
        %v581 = vmul.f32 %v424, %v424
        %v582 = vmul.f32 %v429, %v429
        %v583 = vmul.f32 %v432, %v432
        %v584 = vmul.f32 %v437, %v437
        %v585 = vmul.f32 %v440, %v440
        %v586 = vmul.f32 %v445, %v445
        %v587 = vmul.f32 %v448, %v448
        %v588 = vsel %vm532, %v572, 0.0
        %v589 = vsel %vm532, %v573, 0.0
        %v590 = vadd.f32 %v588, %v589
        %v591 = vsel %vm532, %v574, 0.0
        %v592 = vadd.f32 %v590, %v591
        %v593 = vsel %vm532, %v575, 0.0
        %v594 = vadd.f32 %v592, %v593
        %v595 = vsel %vm532, %v576, 0.0
        %v596 = vadd.f32 %v594, %v595
        %v597 = vsel %vm532, %v577, 0.0
        %v598 = vadd.f32 %v596, %v597
        %v599 = vsel %vm532, %v578, 0.0
        %v600 = vadd.f32 %v598, %v599
        %v601 = vsel %vm532, %v579, 0.0
        %v602 = vadd.f32 %v600, %v601
        %v603 = vsel %vm532, %v580, 0.0
        %v604 = vadd.f32 %v602, %v603
        %v605 = vsel %vm532, %v581, 0.0
        %v606 = vadd.f32 %v604, %v605
        %v607 = vsel %vm532, %v582, 0.0
        %v608 = vadd.f32 %v606, %v607
        %v609 = vsel %vm532, %v583, 0.0
        %v610 = vadd.f32 %v608, %v609
        %v611 = vsel %vm532, %v584, 0.0
        %v612 = vadd.f32 %v610, %v611
        %v613 = vsel %vm532, %v585, 0.0
        %v614 = vadd.f32 %v612, %v613
        %v615 = vsel %vm532, %v586, 0.0
        %v616 = vadd.f32 %v614, %v615
        %v617 = vsel %vm532, %v587, 0.0
        %v618 = vadd.f32 %v616, %v617
        %v619 = vrot.slane %v618, 4
        %v620 = vadd.f32 %v618, %v619
        %v621 = vrot.slane %v620, 2
        %v622 = vadd.f32 %v620, %v621
        %v623 = vrot.slane %v622, 1
        %v624 = vadd.f32 %v622, %v623
        %625 = vst.msk [vmem:[%s236 + $0x1] sm:$0x1] %vm570, %v624
        %s626 = sand.u32 %s117, 1
        %s627 = scalar_lea.sflag [#allocation3], %s626
        %s628 = sand.u32 %s117, 1
        %s629 = smul.addr %s628, 64
        %s630 = scalar_lea.vmem [#allocation2], %s629
        %p631 = scmp.lt.s32.totalorder %s20, 3
        %s632 = scalar_select %p631, %s20, 3
        %s633 = smul.addr %s632, 2
        %s634 = scalar_lea.vmem %s5, %s633
        // Predicated region
        $region37: #{bottleneck_forward.4} parent=35 // pred_check
          %p635 = pneg %p127
        $region38: #{bottleneck_forward.4} parent=35 // pred_check_branch
          %637 = sbr.rel (%p635) target = $region40
        $region39: #{bottleneck_forward.4} parent=35 // pred_region
          %s638 = smul.u32 16, %s20
          %s640 = ssub.s32 1024, 1024
          %641 = vsyncadd %s627, %s640
          %s642 = smul.addr %s638, 64
          %s643 = scalar_lea.hbm %s4, %s642
          %s644 = sshll.u32 %s630, 4
          %s645 = int_to_ptr.vmem [resolvable:$true] %s644
          %650 = dma.vmem_to_hbm [thread:$0]  %s645, 1024, %s643, %s627, 64, 64, 4
        $region40: #{bottleneck_forward.4} parent=35 // pred_fallthru
          _
        // Predicated region
        $region41: #{bottleneck_forward.4} parent=35 // pred_check
          %p651 = pneg %p153
        $region42: #{bottleneck_forward.4} parent=35 // pred_check_branch
          %653 = sbr.rel (%p651) target = $region44
        $region43: #{bottleneck_forward.4} parent=35 // pred_region
          _
        $region44: #{bottleneck_forward.4} parent=35 // pred_fallthru
          _
      $region36: #{bottleneck_forward.4} parent=5 // pred_fallthru
        _
      %p654 = scmp.le.s32.totalorder 2, %s15
      // Predicated region
      $region45: #{bottleneck_forward.4} parent=5 // pred_check
        %p655 = pneg %p654
      $region46: #{bottleneck_forward.4} parent=5 // pred_check_branch
        %657 = sbr.rel (%p655) target = $region48
      $region47: #{bottleneck_forward.4} parent=5 // pred_region
        %s658 = ssub.s32 %s15, 2
        // Predicated region
        $region49: #{bottleneck_forward.4} parent=47 // pred_check
          %p659 = pneg %p133
        $region50: #{bottleneck_forward.4} parent=47 // pred_check_branch
          %661 = sbr.rel (%p659) target = $region52
        $region51: #{bottleneck_forward.4} parent=47 // pred_region
          %s662 = sand.u32 %s118, 1
          %s663 = scalar_lea.sflag [#allocation3], %s662
          %s664 = sand.u32 %s118, 1
          %s665 = smul.addr %s664, 64
          %s666 = scalar_lea.vmem [#allocation2], %s665
          %667 = dma.done %s663, 1024
        $region52: #{bottleneck_forward.4} parent=47 // pred_fallthru
          _
        // Predicated region
        $region53: #{bottleneck_forward.4} parent=47 // pred_check
          %p668 = pneg %p159
        $region54: #{bottleneck_forward.4} parent=47 // pred_check_branch
          %670 = sbr.rel (%p668) target = $region56
        $region55: #{bottleneck_forward.4} parent=47 // pred_region
          %p671 = scmp.lt.s32.totalorder %s21, 3
          %s672 = scalar_select %p671, %s21, 3
          %s673 = smul.addr %s672, 2
          %s674 = scalar_lea.vmem %s5, %s673
        $region56: #{bottleneck_forward.4} parent=47 // pred_fallthru
          _
      $region48: #{bottleneck_forward.4} parent=5 // pred_fallthru
        _
    $region6: #{bottleneck_forward.4} parent=1 // loop_footer
      %s19 = sadd.s32 1, %s15
    $region7: #{bottleneck_forward.4} parent=1 // loop_footer_branch
      %14 = sbr.rel target = $region3
    $region8: #{bottleneck_forward.4} parent=1 // loop_exit
      _
    %675 = vsyncpa [#allocation3], 1
    %s676 = scalar_lea.sflag [#allocation3], 1
    %677 = vsyncpa %s676, 1

// kernel: bottleneck_forward.5
$region0: #{bottleneck_forward.5}
  #allocation0 [shape = 'u32[]', space=smem, size = 0x4, offset = 0x4, fixed_abs, tag = 'smem constant byte address 0x4 - core index']
  #allocation1 [shape = 'u32[144,128]{1,0:T(1,128)}', space=vmem, size = 0x12000, scoped, tag = 'internal scratch']
  %s0 = inlined_call_operand.hbm [shape: bf16[2,16,16,16], index: 0, kind: input, shape index: {}, may-alias: {0,1,2}]
  %s1 = inlined_call_operand.hbm [shape: bf16[2,16,16,16], index: 1, kind: input, shape index: {}, may-alias: {0,1,2}]
  %s2 = inlined_call_operand.hbm [shape: bf16[2,16,16,16], index: 2, kind: input, shape index: {}, may-alias: {0,1,2}]
  %s3 = inlined_call_operand.hbm [shape: f32[2,16,16,4], index: 3, kind: input, shape index: {}]
  %s4 = inlined_call_operand.hbm [shape: f32[1,16], index: 4, kind: input, shape index: {}]
  %s5 = inlined_call_operand.hbm [shape: f32[1,16], index: 5, kind: input, shape index: {}]
  %s6 = inlined_call_operand.hbm [shape: bf16[48,12], index: 6, kind: input, shape index: {}]
  %s7 = inlined_call_operand.hbm [shape: f32[2,16,16,8], index: 7, kind: output, shape index: {}]
  %s8 = sld [smem:[#allocation0]]
  $region89: #{bottleneck_forward.5} parent=0
    _
  %s10 = ssub.s32 1, %s8
  %s11 = scalar_select 0, %s10, %s8
  $region1: #{bottleneck_forward.5} parent=0
    #allocation2 [shape = 'u8[65536]{0}', space=vmem, size = 0x10000, scoped, tag = 'input window, operand 0']
    #allocation3 [shape = 's32[2]{0}', space=sflag, size = 0x8, scoped, tag = 'scoped memory for bottleneck_forward.5']
    #allocation4 [shape = 's32[2]{0}', space=sflag, size = 0x8, scoped, tag = 'scoped memory for bottleneck_forward.5']
    #allocation5 [shape = 'u8[8192]{0}', space=vmem, size = 0x2000, scoped, tag = 'input window, operand 1']
    #allocation6 [shape = 's32[2]{0}', space=sflag, size = 0x8, scoped, tag = 'scoped memory for bottleneck_forward.5']
    #allocation7 [shape = 'u8[8192]{0}', space=vmem, size = 0x2000, scoped, tag = 'input window, operand 2']
    #allocation8 [shape = 'u8[131072]{0}', space=vmem, size = 0x20000, scoped, tag = 'input window, operand 3']
    #allocation9 [shape = 's32[2]{0}', space=sflag, size = 0x8, scoped, tag = 'scoped memory for bottleneck_forward.5']
    #allocation10 [shape = 'u8[512]{0}', space=vmem, size = 0x400, scoped, tag = 'input window, operand 4, single buffered']
    #allocation11 [shape = 'u8[512]{0}', space=vmem, size = 0x400, scoped, tag = 'input window, operand 5, single buffered']
    #allocation12 [shape = 's32[1]{0}', space=sflag, size = 0x4, scoped, tag = 'scoped memory for bottleneck_forward.5']
    #allocation13 [shape = 'u8[12288]{0}', space=vmem, size = 0x3000, scoped, tag = 'input window, operand 6, single buffered']
    #allocation14 [shape = 'u8[131072]{0}', space=vmem, size = 0x20000, scoped, tag = 'output window, operand 0']
    %12 = vsyncpa [#allocation3], 0
    %s13 = scalar_lea.sflag [#allocation3], 1
    %14 = vsyncpa %s13, 0
    %15 = vsyncpa [#allocation6], 0
    %s16 = scalar_lea.sflag [#allocation6], 1
    %17 = vsyncpa %s16, 0
    %18 = vsyncpa [#allocation9], 0
    %s19 = scalar_lea.sflag [#allocation9], 1
    %20 = vsyncpa %s19, 0
    %21 = vsyncpa [#allocation12], 0
    %22 = vsyncpa [#allocation4], 0
    %s23 = scalar_lea.sflag [#allocation4], 1
    %24 = vsyncpa %s23, 0
    loop: start=0, step=1, limit=6
    $region2: #{bottleneck_forward.5} parent=1 // loop_pre_header
      _
    $region3: #{bottleneck_forward.5} parent=1 // loop_header
      %s26 = sphi 0, %s30
      %p27 = scmp.ge.s32.totalorder %s26, 6
      %s33 = sphi 0, %s45
      %s34 = sphi 0, %s41
      %s35 = sphi 0, %s33
      %s36 = sphi 0, %s34
      %s37 = sphi 0, %s35
      %s38 = sphi 0, %s36
      %s50 = sphi 0, %s52
      %s53 = sphi 0, %s50
      %s54 = sphi 0, %s53
      %s70 = sphi 0, %s54
      %s86 = sphi 0, %s88
      %s89 = sphi 0, %s86
      %s90 = sphi 0, %s89
      %s106 = sphi 0, %s90
      %s122 = sphi 0, %s124
      %s125 = sphi 0, %s122
      %s126 = sphi 0, %s125
      %s142 = sphi 0, %s126
      %s150 = sphi 0, %s152
      %s153 = sphi 0, %s150
      %s154 = sphi 0, %s153
      %s170 = sphi 0, %s154
      %s174 = sphi 0, %s174
      %s176 = sphi 0, %s174
      %s177 = sphi 0, %s176
      %s191 = sphi 0, %s177
      %s195 = sphi 0, %s195
      %s197 = sphi 0, %s195
      %s198 = sphi 0, %s197
      %s212 = sphi 0, %s198
      %s216 = sphi 0, %s216
      %s218 = sphi 0, %s216
      %s219 = sphi 0, %s218
      %s233 = sphi 0, %s219
      %s241 = sphi 0, %s243
      %s244 = sphi 0, %s241
      %s245 = sphi 0, %s244
      %s261 = sphi 0, %s245
    $region4: #{bottleneck_forward.5} parent=1 // loop_header_branch
      %29 = sbr.rel (%p27) target = $region8
    $region5: #{bottleneck_forward.5} parent=1 // loop_body
      %s31 = ssub.s32 %s26, 1
      %s32 = ssub.s32 %s26, 2
      %s39 = sadd.s32 1, %s34
      %p40 = scmp.ge.s32.totalorder %s39, 2
      %s41 = scalar_select %p40, 0, %s39
      %s42 = sadd.s32 1, %s33
      %s43 = scalar_select %p40, %s42, %s33
      %p44 = scmp.ge.s32.totalorder %s43, 2
      %s45 = scalar_select %p44, 0, %s43
      %s46 = ssub.s32 %s33, %s45
      %s47 = ssub.s32 %s34, %s41
      %s48 = sor.u32 %s46, %s47
      %p49 = scmp.eq.s32.totalorder %s48, 0
      %s51 = sadd.s32 %s50, 1
      %s52 = scalar_select %p49, %s50, %s51
      %p55 = pneg %p49
      %p56 = scmp.eq.s32.totalorder %s26, 3
      %p57 = por %p55, %p56
      %p58 = scmp.ne.s32.totalorder %s50, %s53
      %p59 = scmp.eq.s32.totalorder %s26, 0
      %p60 = por %p58, %p59
      %p61 = scmp.ne.s32.totalorder %s50, %s53
      %p62 = scmp.eq.s32.totalorder %s31, 3
      %p63 = por %p61, %p62
      %p64 = scmp.ne.s32.totalorder %s53, %s54
      %p65 = scmp.eq.s32.totalorder %s31, 0
      %p66 = por %p64, %p65
      %p67 = scmp.ne.s32.totalorder %s53, %s54
      %p68 = scmp.eq.s32.totalorder %s32, 3
      %p69 = por %p67, %p68
      %p71 = scmp.ne.s32.totalorder %s54, %s70
      %p72 = scmp.eq.s32.totalorder %s32, 0
      %p73 = por %p71, %p72
      %s74 = smul.u32 %s34, 8
      %s75 = ssub.s32 %s74, 1
      %p76 = scmp.gt.s32.totalorder %s75, 0
      %s77 = scalar_select %p76, %s75, 0
      %s78 = smul.u32 %s41, 8
      %s79 = ssub.s32 %s78, 1
      %p80 = scmp.gt.s32.totalorder %s79, 0
      %s81 = scalar_select %p80, %s79, 0
      %s82 = ssub.s32 %s33, %s45
      %s83 = ssub.s32 %s77, %s81
      %s84 = sor.u32 %s82, %s83
      %p85 = scmp.eq.s32.totalorder %s84, 0
      %s87 = sadd.s32 %s86, 1
      %s88 = scalar_select %p85, %s86, %s87
      %p91 = pneg %p85
      %p92 = scmp.eq.s32.totalorder %s26, 3
      %p93 = por %p91, %p92
      %p94 = scmp.ne.s32.totalorder %s86, %s89
      %p95 = scmp.eq.s32.totalorder %s26, 0
      %p96 = por %p94, %p95
      %p97 = scmp.ne.s32.totalorder %s86, %s89
      %p98 = scmp.eq.s32.totalorder %s31, 3
      %p99 = por %p97, %p98
      %p100 = scmp.ne.s32.totalorder %s89, %s90
      %p101 = scmp.eq.s32.totalorder %s31, 0
      %p102 = por %p100, %p101
      %p103 = scmp.ne.s32.totalorder %s89, %s90
      %p104 = scmp.eq.s32.totalorder %s32, 3
      %p105 = por %p103, %p104
      %p107 = scmp.ne.s32.totalorder %s90, %s106
      %p108 = scmp.eq.s32.totalorder %s32, 0
      %p109 = por %p107, %p108
      %s110 = smul.u32 %s34, 8
      %s111 = sadd.s32 %s110, 8
      %p112 = scmp.lt.s32.totalorder %s111, 15
      %s113 = scalar_select %p112, %s111, 15
      %s114 = smul.u32 %s41, 8
      %s115 = sadd.s32 %s114, 8
      %p116 = scmp.lt.s32.totalorder %s115, 15
      %s117 = scalar_select %p116, %s115, 15
      %s118 = ssub.s32 %s33, %s45
      %s119 = ssub.s32 %s113, %s117
      %s120 = sor.u32 %s118, %s119
      %p121 = scmp.eq.s32.totalorder %s120, 0
      %s123 = sadd.s32 %s122, 1
      %s124 = scalar_select %p121, %s122, %s123
      %p127 = pneg %p121
      %p128 = scmp.eq.s32.totalorder %s26, 3
      %p129 = por %p127, %p128
      %p130 = scmp.ne.s32.totalorder %s122, %s125
      %p131 = scmp.eq.s32.totalorder %s26, 0
      %p132 = por %p130, %p131
      %p133 = scmp.ne.s32.totalorder %s122, %s125
      %p134 = scmp.eq.s32.totalorder %s31, 3
      %p135 = por %p133, %p134
      %p136 = scmp.ne.s32.totalorder %s125, %s126
      %p137 = scmp.eq.s32.totalorder %s31, 0
      %p138 = por %p136, %p137
      %p139 = scmp.ne.s32.totalorder %s125, %s126
      %p140 = scmp.eq.s32.totalorder %s32, 3
      %p141 = por %p139, %p140
      %p143 = scmp.ne.s32.totalorder %s126, %s142
      %p144 = scmp.eq.s32.totalorder %s32, 0
      %p145 = por %p143, %p144
      %s146 = ssub.s32 %s33, %s45
      %s147 = ssub.s32 %s34, %s41
      %s148 = sor.u32 %s146, %s147
      %p149 = scmp.eq.s32.totalorder %s148, 0
      %s151 = sadd.s32 %s150, 1
      %s152 = scalar_select %p149, %s150, %s151
      %p155 = pneg %p149
      %p156 = scmp.eq.s32.totalorder %s26, 3
      %p157 = por %p155, %p156
      %p158 = scmp.ne.s32.totalorder %s150, %s153
      %p159 = scmp.eq.s32.totalorder %s26, 0
      %p160 = por %p158, %p159
      %p161 = scmp.ne.s32.totalorder %s150, %s153
      %p162 = scmp.eq.s32.totalorder %s31, 3
      %p163 = por %p161, %p162
      %p164 = scmp.ne.s32.totalorder %s153, %s154
      %p165 = scmp.eq.s32.totalorder %s31, 0
      %p166 = por %p164, %p165
      %p167 = scmp.ne.s32.totalorder %s153, %s154
      %p168 = scmp.eq.s32.totalorder %s32, 3
      %p169 = por %p167, %p168
      %p171 = scmp.ne.s32.totalorder %s154, %s170
      %p172 = scmp.eq.s32.totalorder %s32, 0
      %p173 = por %p171, %p172
      %s175 = sadd.s32 %s174, 1
      %p178 = scmp.eq.s32.totalorder %s26, 3
      %p179 = scmp.ne.s32.totalorder %s174, %s176
      %p180 = scmp.eq.s32.totalorder %s26, 0
      %p181 = por %p179, %p180
      %p182 = scmp.ne.s32.totalorder %s174, %s176
      %p183 = scmp.eq.s32.totalorder %s31, 3
      %p184 = por %p182, %p183
      %p185 = scmp.ne.s32.totalorder %s176, %s177
      %p186 = scmp.eq.s32.totalorder %s31, 0
      %p187 = por %p185, %p186
      %p188 = scmp.ne.s32.totalorder %s176, %s177
      %p189 = scmp.eq.s32.totalorder %s32, 3
      %p190 = por %p188, %p189
      %p192 = scmp.ne.s32.totalorder %s177, %s191
      %p193 = scmp.eq.s32.totalorder %s32, 0
      %p194 = por %p192, %p193
      %s196 = sadd.s32 %s195, 1
      %p199 = scmp.eq.s32.totalorder %s26, 3
      %p200 = scmp.ne.s32.totalorder %s195, %s197
      %p201 = scmp.eq.s32.totalorder %s26, 0
      %p202 = por %p200, %p201
      %p203 = scmp.ne.s32.totalorder %s195, %s197
      %p204 = scmp.eq.s32.totalorder %s31, 3
      %p205 = por %p203, %p204
      %p206 = scmp.ne.s32.totalorder %s197, %s198
      %p207 = scmp.eq.s32.totalorder %s31, 0
      %p208 = por %p206, %p207
      %p209 = scmp.ne.s32.totalorder %s197, %s198
      %p210 = scmp.eq.s32.totalorder %s32, 3
      %p211 = por %p209, %p210
      %p213 = scmp.ne.s32.totalorder %s198, %s212
      %p214 = scmp.eq.s32.totalorder %s32, 0
      %p215 = por %p213, %p214
      %s217 = sadd.s32 %s216, 1
      %p220 = scmp.eq.s32.totalorder %s26, 3
      %p221 = scmp.ne.s32.totalorder %s216, %s218
      %p222 = scmp.eq.s32.totalorder %s26, 0
      %p223 = por %p221, %p222
      %p224 = scmp.ne.s32.totalorder %s216, %s218
      %p225 = scmp.eq.s32.totalorder %s31, 3
      %p226 = por %p224, %p225
      %p227 = scmp.ne.s32.totalorder %s218, %s219
      %p228 = scmp.eq.s32.totalorder %s31, 0
      %p229 = por %p227, %p228
      %p230 = scmp.ne.s32.totalorder %s218, %s219
      %p231 = scmp.eq.s32.totalorder %s32, 3
      %p232 = por %p230, %p231
      %p234 = scmp.ne.s32.totalorder %s219, %s233
      %p235 = scmp.eq.s32.totalorder %s32, 0
      %p236 = por %p234, %p235
      %s237 = ssub.s32 %s33, %s45
      %s238 = ssub.s32 %s34, %s41
      %s239 = sor.u32 %s237, %s238
      %p240 = scmp.eq.s32.totalorder %s239, 0
      %s242 = sadd.s32 %s241, 1
      %s243 = scalar_select %p240, %s241, %s242
      %p246 = pneg %p240
      %p247 = scmp.eq.s32.totalorder %s26, 3
      %p248 = por %p246, %p247
      %p249 = scmp.ne.s32.totalorder %s241, %s244
      %p250 = scmp.eq.s32.totalorder %s26, 0
      %p251 = por %p249, %p250
      %p252 = scmp.ne.s32.totalorder %s241, %s244
      %p253 = scmp.eq.s32.totalorder %s31, 3
      %p254 = por %p252, %p253
      %p255 = scmp.ne.s32.totalorder %s244, %s245
      %p256 = scmp.eq.s32.totalorder %s31, 0
      %p257 = por %p255, %p256
      %p258 = scmp.ne.s32.totalorder %s244, %s245
      %p259 = scmp.eq.s32.totalorder %s32, 3
      %p260 = por %p258, %p259
      %p262 = scmp.ne.s32.totalorder %s245, %s261
      %p263 = scmp.eq.s32.totalorder %s32, 0
      %p264 = por %p262, %p263
      %p265 = scmp.le.s32.totalorder 1, %s26
      %p266 = scmp.lt.s32.totalorder %s26, 5
      %p267 = pnand %p265, %p266
      %p268 = pneg %p267
      // Predicated region
      $region9: #{bottleneck_forward.5} parent=5 // pred_check
        _
      $region10: #{bottleneck_forward.5} parent=5 // pred_check_branch
        %270 = sbr.rel (%p267) target = $region12
      $region11: #{bottleneck_forward.5} parent=5 // pred_region
        %s271 = ssub.s32 %s26, 1
        // Predicated region
        $region13: #{bottleneck_forward.5} parent=11 // pred_check
          %p272 = pneg %p187
        $region14: #{bottleneck_forward.5} parent=11 // pred_check_branch
          %274 = sbr.rel (%p272) target = $region16
        $region15: #{bottleneck_forward.5} parent=11 // pred_region
          %s276 = ssub.s32 16, 16
          %277 = vsyncadd [#allocation9], %s276
          %s279 = sshll.u32 [#allocation10], 4
          %s280 = int_to_ptr.vmem [resolvable:$true] %s279
          %282 = dma.hbm_to_vmem [thread:$0]  %s4, 16, %s280, [#allocation9]
        $region16: #{bottleneck_forward.5} parent=11 // pred_fallthru
          _
        // Predicated region
        $region17: #{bottleneck_forward.5} parent=11 // pred_check
          %p283 = pneg %p208
        $region18: #{bottleneck_forward.5} parent=11 // pred_check_branch
          %285 = sbr.rel (%p283) target = $region20
        $region19: #{bottleneck_forward.5} parent=11 // pred_region
          %s287 = ssub.s32 16, 16
          %288 = vsyncadd [#allocation12], %s287
          %s290 = sshll.u32 [#allocation11], 4
          %s291 = int_to_ptr.vmem [resolvable:$true] %s290
          %293 = dma.hbm_to_vmem [thread:$0]  %s5, 16, %s291, [#allocation12]
        $region20: #{bottleneck_forward.5} parent=11 // pred_fallthru
          _
        // Predicated region
        $region21: #{bottleneck_forward.5} parent=11 // pred_check
          %p294 = pneg %p229
        $region22: #{bottleneck_forward.5} parent=11 // pred_check_branch
          %296 = sbr.rel (%p294) target = $region24
        $region23: #{bottleneck_forward.5} parent=11 // pred_region
          %s298 = ssub.s32 384, 384
          %299 = vsyncadd [#allocation12], %s298
          %s300 = sshll.u32 [#allocation13], 4
          %s301 = int_to_ptr.vmem [resolvable:$true] %s300
          %306 = dma.hbm_to_vmem [thread:$0]  %s6, 384, %s301, [#allocation12], 64, 64, 4
        $region24: #{bottleneck_forward.5} parent=11 // pred_fallthru
          _
      $region12: #{bottleneck_forward.5} parent=5 // pred_fallthru
        _
      %p307 = scmp.lt.s32.totalorder %s26, 4
      // Predicated region
      $region25: #{bottleneck_forward.5} parent=5 // pred_check
        %p308 = pneg %p307
      $region26: #{bottleneck_forward.5} parent=5 // pred_check_branch
        %310 = sbr.rel (%p308) target = $region28
      $region27: #{bottleneck_forward.5} parent=5 // pred_region
        // Predicated region
        $region29: #{bottleneck_forward.5} parent=27 // pred_check
          %p311 = pneg %p60
        $region30: #{bottleneck_forward.5} parent=27 // pred_check_branch
          %313 = sbr.rel (%p311) target = $region32
        $region31: #{bottleneck_forward.5} parent=27 // pred_region
          %s314 = sand.u32 %s50, 1
          %s315 = scalar_lea.sflag [#allocation3], %s314
          %s316 = sand.u32 %s50, 1
          %s317 = smul.addr %s316, 64
          %s318 = scalar_lea.vmem [#allocation2], %s317
          %s319 = smul.u32 8, %s34
          %s321 = ssub.s32 1024, 1024
          %322 = vsyncadd %s315, %s321
          %s323 = smul.addr %s319, 2
          %s324 = smul.addr %s33, 32
          %s325 = sadd.s32 %s323, %s324
          %s326 = smul.addr %s325, 64
          %s327 = scalar_lea.hbm %s0, %s326
          %s328 = sshll.u32 %s318, 4
          %s329 = int_to_ptr.vmem [resolvable:$true] %s328
          %334 = dma.hbm_to_vmem [thread:$0]  %s327, 1024, %s329, %s315, 64, 64, 4
        $region32: #{bottleneck_forward.5} parent=27 // pred_fallthru
          _
        // Predicated region
        $region33: #{bottleneck_forward.5} parent=27 // pred_check
          %p335 = pneg %p96
        $region34: #{bottleneck_forward.5} parent=27 // pred_check_branch
          %337 = sbr.rel (%p335) target = $region36
        $region35: #{bottleneck_forward.5} parent=27 // pred_region
          %s338 = sand.u32 %s26, 1
          %s339 = scalar_lea.sflag [#allocation6], %s338
          %s340 = sand.u32 %s86, 1
          %s341 = smul.addr %s340, 8
          %s342 = scalar_lea.vmem [#allocation5], %s341
          %s343 = smul.u32 %s34, 8
          %s344 = ssub.s32 %s343, 1
          %p345 = scmp.gt.s32.totalorder %s344, 0
          %s346 = scalar_select %p345, %s344, 0
          %s348 = ssub.s32 128, 128
          %349 = vsyncadd %s339, %s348
          %s350 = smul.addr %s346, 2
          %s351 = smul.addr %s33, 32
          %s352 = sadd.s32 %s350, %s351
          %s353 = smul.addr %s352, 64
          %s354 = scalar_lea.hbm %s1, %s353
          %s355 = sshll.u32 %s342, 4
          %s356 = int_to_ptr.vmem [resolvable:$true] %s355
          %361 = dma.hbm_to_vmem [thread:$0]  %s354, 128, %s356, %s339, 64, 64, 4
        $region36: #{bottleneck_forward.5} parent=27 // pred_fallthru
          _
        // Predicated region
        $region37: #{bottleneck_forward.5} parent=27 // pred_check
          %p362 = pneg %p132
        $region38: #{bottleneck_forward.5} parent=27 // pred_check_branch
          %364 = sbr.rel (%p362) target = $region40
        $region39: #{bottleneck_forward.5} parent=27 // pred_region
          %s365 = sand.u32 %s26, 1
          %s366 = scalar_lea.sflag [#allocation6], %s365
          %s367 = sand.u32 %s122, 1
          %s368 = smul.addr %s367, 8
          %s369 = scalar_lea.vmem [#allocation7], %s368
          %s370 = smul.u32 %s34, 8
          %s371 = sadd.s32 %s370, 8
          %p372 = scmp.lt.s32.totalorder %s371, 15
          %s373 = scalar_select %p372, %s371, 15
          %s375 = ssub.s32 128, 128
          %376 = vsyncadd %s366, %s375
          %s377 = smul.addr %s373, 2
          %s378 = smul.addr %s33, 32
          %s379 = sadd.s32 %s377, %s378
          %s380 = smul.addr %s379, 64
          %s381 = scalar_lea.hbm %s2, %s380
          %s382 = sshll.u32 %s369, 4
          %s383 = int_to_ptr.vmem [resolvable:$true] %s382
          %388 = dma.hbm_to_vmem [thread:$0]  %s381, 128, %s383, %s366, 64, 64, 4
        $region40: #{bottleneck_forward.5} parent=27 // pred_fallthru
          _
        // Predicated region
        $region41: #{bottleneck_forward.5} parent=27 // pred_check
          %p389 = pneg %p160
        $region42: #{bottleneck_forward.5} parent=27 // pred_check_branch
          %391 = sbr.rel (%p389) target = $region44
        $region43: #{bottleneck_forward.5} parent=27 // pred_region
          %s392 = sand.u32 %s26, 1
          %s393 = scalar_lea.sflag [#allocation9], %s392
          %s394 = sand.u32 %s150, 1
          %s395 = smul.addr %s394, 128
          %s396 = scalar_lea.vmem [#allocation8], %s395
          %s397 = smul.u32 8, %s34
          %s399 = ssub.s32 2048, 2048
          %400 = vsyncadd %s393, %s399
          %s401 = smul.addr %s397, 2
          %s402 = smul.addr %s33, 32
          %s403 = sadd.s32 %s401, %s402
          %s404 = smul.addr %s403, 128
          %s405 = scalar_lea.hbm %s3, %s404
          %s406 = sshll.u32 %s396, 4
          %s407 = int_to_ptr.vmem [resolvable:$true] %s406
          %412 = dma.hbm_to_vmem [thread:$0]  %s405, 2048, %s407, %s393, 128, 128, 8
        $region44: #{bottleneck_forward.5} parent=27 // pred_fallthru
          _
      $region28: #{bottleneck_forward.5} parent=5 // pred_fallthru
        _
      %p413 = scmp.le.s32.totalorder 1, %s26
      %p414 = scmp.lt.s32.totalorder %s26, 5
      %p415 = pnand %p413, %p414
      %p416 = pneg %p415
      // Predicated region
      $region45: #{bottleneck_forward.5} parent=5 // pred_check
        _
      $region46: #{bottleneck_forward.5} parent=5 // pred_check_branch
        %418 = sbr.rel (%p415) target = $region48
      $region47: #{bottleneck_forward.5} parent=5 // pred_region
        %s419 = ssub.s32 %s26, 1
        %s420 = sand.u32 %s53, 1
        %s421 = scalar_lea.sflag [#allocation3], %s420
        %s422 = sand.u32 %s53, 1
        %s423 = smul.addr %s422, 64
        %s424 = scalar_lea.vmem [#allocation2], %s423
        // Predicated region
        $region49: #{bottleneck_forward.5} parent=47 // pred_check
          %p425 = pneg %p66
        $region50: #{bottleneck_forward.5} parent=47 // pred_check_branch
          %427 = sbr.rel (%p425) target = $region52
        $region51: #{bottleneck_forward.5} parent=47 // pred_region
          %428 = dma.done %s421, 1024
        $region52: #{bottleneck_forward.5} parent=47 // pred_fallthru
          _
        %s429 = sand.u32 %s31, 1
        %s430 = scalar_lea.sflag [#allocation6], %s429
        %s431 = sand.u32 %s89, 1
        %s432 = smul.addr %s431, 8
        %s433 = scalar_lea.vmem [#allocation5], %s432
        // Predicated region
        $region53: #{bottleneck_forward.5} parent=47 // pred_check
          %p434 = pneg %p102
        $region54: #{bottleneck_forward.5} parent=47 // pred_check_branch
          %436 = sbr.rel (%p434) target = $region56
        $region55: #{bottleneck_forward.5} parent=47 // pred_region
          %437 = dma.done %s430, 128
        $region56: #{bottleneck_forward.5} parent=47 // pred_fallthru
          _
        %s438 = sand.u32 %s31, 1
        %s439 = scalar_lea.sflag [#allocation6], %s438
        %s440 = sand.u32 %s125, 1
        %s441 = smul.addr %s440, 8
        %s442 = scalar_lea.vmem [#allocation7], %s441
        // Predicated region
        $region57: #{bottleneck_forward.5} parent=47 // pred_check
          %p443 = pneg %p138
        $region58: #{bottleneck_forward.5} parent=47 // pred_check_branch
          %445 = sbr.rel (%p443) target = $region60
        $region59: #{bottleneck_forward.5} parent=47 // pred_region
          %446 = dma.done %s439, 128
        $region60: #{bottleneck_forward.5} parent=47 // pred_fallthru
          _
        %s447 = sand.u32 %s31, 1
        %s448 = scalar_lea.sflag [#allocation9], %s447
        %s449 = sand.u32 %s153, 1
        %s450 = smul.addr %s449, 128
        %s451 = scalar_lea.vmem [#allocation8], %s450
        // Predicated region
        $region61: #{bottleneck_forward.5} parent=47 // pred_check
          %p452 = pneg %p166
        $region62: #{bottleneck_forward.5} parent=47 // pred_check_branch
          %454 = sbr.rel (%p452) target = $region64
        $region63: #{bottleneck_forward.5} parent=47 // pred_region
          %455 = dma.done %s448, 2048
        $region64: #{bottleneck_forward.5} parent=47 // pred_fallthru
          _
        // Predicated region
        $region65: #{bottleneck_forward.5} parent=47 // pred_check
          %p456 = pneg %p187
        $region66: #{bottleneck_forward.5} parent=47 // pred_check_branch
          %458 = sbr.rel (%p456) target = $region68
        $region67: #{bottleneck_forward.5} parent=47 // pred_region
          %459 = dma.done [#allocation9], 16
        $region68: #{bottleneck_forward.5} parent=47 // pred_fallthru
          _
        // Predicated region
        $region69: #{bottleneck_forward.5} parent=47 // pred_check
          %p460 = pneg %p208
        $region70: #{bottleneck_forward.5} parent=47 // pred_check_branch
          %462 = sbr.rel (%p460) target = $region72
        $region71: #{bottleneck_forward.5} parent=47 // pred_region
          %463 = dma.done [#allocation12], 16
        $region72: #{bottleneck_forward.5} parent=47 // pred_fallthru
          _
        // Predicated region
        $region73: #{bottleneck_forward.5} parent=47 // pred_check
          %p464 = pneg %p229
        $region74: #{bottleneck_forward.5} parent=47 // pred_check_branch
          %466 = sbr.rel (%p464) target = $region76
        $region75: #{bottleneck_forward.5} parent=47 // pred_region
          %467 = dma.done [#allocation12], 384
        $region76: #{bottleneck_forward.5} parent=47 // pred_fallthru
          _
        %s468 = sand.u32 %s53, 1
        %s469 = scalar_lea.sflag [#allocation3], %s468
        %s470 = sand.u32 %s53, 1
        %s471 = smul.addr %s470, 64
        %s472 = scalar_lea.vmem [#allocation2], %s471
        %p473 = pneg %p66
        %p474 = pneg %p63
        %s475 = sand.u32 %s31, 1
        %s476 = scalar_lea.sflag [#allocation6], %s475
        %s477 = sand.u32 %s89, 1
        %s478 = smul.addr %s477, 8
        %s479 = scalar_lea.vmem [#allocation5], %s478
        %p480 = pneg %p102
        %p481 = pneg %p99
        %s482 = sand.u32 %s31, 1
        %s483 = scalar_lea.sflag [#allocation6], %s482
        %s484 = sand.u32 %s125, 1
        %s485 = smul.addr %s484, 8
        %s486 = scalar_lea.vmem [#allocation7], %s485
        %p487 = pneg %p138
        %p488 = pneg %p135
        %s489 = sand.u32 %s31, 1
        %s490 = scalar_lea.sflag [#allocation9], %s489
        %s491 = sand.u32 %s153, 1
        %s492 = smul.addr %s491, 128
        %s493 = scalar_lea.vmem [#allocation8], %s492
        %p494 = pneg %p166
        %p495 = pneg %p163
        %p496 = pneg %p187
        %p497 = pneg %p184
        %p498 = pneg %p208
        %p499 = pneg %p205
        %p500 = pneg %p229
        %p501 = pneg %p226
        %p502 = pneg %p257
        %p503 = pneg %p254
        %s504 = sand.u32 %s244, 1
        %s505 = scalar_lea.sflag [#allocation4], %s504
        %s506 = sand.u32 %s244, 1
        %s507 = smul.addr %s506, 128
        %s508 = scalar_lea.vmem [#allocation14], %s507
        %s509 = smul.u32 8, %s36
        %s510 = smul.u32 %s36, 8
        %s511 = ssub.s32 %s510, 1
        %p512 = scmp.gt.s32.totalorder %s511, 0
        %s513 = scalar_select %p512, %s511, 0
        %s514 = smul.u32 %s36, 8
        %s515 = sadd.s32 %s514, 8
        %p516 = scmp.lt.s32.totalorder %s515, 15
        %s517 = scalar_select %p516, %s515, 15
        %s518 = smul.u32 8, %s36
        %s519 = smul.u32 8, %s36
        %v521 = vld [vmem:[%s433] sm:$0xf]
        %v522 = vld [vmem:[%s433 + $0x4] sm:$0xf]
        %v523 = vld [vmem:[%s424] sm:$0xf]
        %v524 = vld [vmem:[%s424 + $0x4] sm:$0xf]
        %v525 = vld [vmem:[%s424 + $0x8] sm:$0xf]
        %v526 = vld [vmem:[%s424 + $0xc] sm:$0xf]
        %v527 = vld [vmem:[%s424 + $0x10] sm:$0xf]
        %v528 = vld [vmem:[%s424 + $0x14] sm:$0xf]
        %v529 = vld [vmem:[%s424 + $0x18] sm:$0xf]
        %v530 = vld [vmem:[%s424 + $0x1c] sm:$0xf]
        %v531 = vld [vmem:[%s424 + $0x20] sm:$0xf]
        %v532 = vld [vmem:[%s424 + $0x24] sm:$0xf]
        %v533 = vld [vmem:[%s424 + $0x28] sm:$0xf]
        %v534 = vld [vmem:[%s424 + $0x2c] sm:$0xf]
        %v535 = vld [vmem:[%s424 + $0x30] sm:$0xf]
        %v536 = vld [vmem:[%s424 + $0x34] sm:$0xf]
        %v537 = vld [vmem:[%s424 + $0x38] sm:$0xf]
        %v538 = vld [vmem:[%s424 + $0x3c] sm:$0xf]
        %v539 = vld [vmem:[%s442] sm:$0xf]
        %v540 = vld [vmem:[%s442 + $0x4] sm:$0xf]
        %v541 = vunpack.c.l.bf16 %v521
        %v542 = vunpack.c.l.bf16 %v522
        %v543 = vunpack.c.l.bf16 %v523
        %v544 = vunpack.c.l.bf16 %v524
        %v545 = vunpack.c.l.bf16 %v525
        %v546 = vunpack.c.l.bf16 %v526
        %v547 = vunpack.c.l.bf16 %v527
        %v548 = vunpack.c.l.bf16 %v528
        %v549 = vunpack.c.l.bf16 %v529
        %v550 = vunpack.c.l.bf16 %v530
        %v551 = vunpack.c.l.bf16 %v531
        %v552 = vunpack.c.l.bf16 %v532
        %v553 = vunpack.c.l.bf16 %v533
        %v554 = vunpack.c.l.bf16 %v534
        %v555 = vunpack.c.l.bf16 %v535
        %v556 = vunpack.c.l.bf16 %v536
        %v557 = vunpack.c.l.bf16 %v537
        %v558 = vunpack.c.l.bf16 %v538
        %v559 = vunpack.c.l.bf16 %v539
        %v560 = vunpack.c.l.bf16 %v540
        %v561 = vld [vmem:[#allocation10] sm:$0x1]
        %v563 = vlaneseq
        %v564 = vshrl.u32 %v563, 7
        %v565 = vsub.s32 0, %v564
        %v566 = vrot.slane %v561, %v565
        %v568 = vmul.f32 %v541, %v566
        %v569 = vmul.f32 %v542, %v566
        %v570 = vmul.f32 %v543, %v566
        %v571 = vmul.f32 %v544, %v566
        %v572 = vmul.f32 %v545, %v566
        %v573 = vmul.f32 %v546, %v566
        %v574 = vmul.f32 %v547, %v566
        %v575 = vmul.f32 %v548, %v566
        %v576 = vmul.f32 %v549, %v566
        %v577 = vmul.f32 %v550, %v566
        %v578 = vmul.f32 %v551, %v566
        %v579 = vmul.f32 %v552, %v566
        %v580 = vmul.f32 %v553, %v566
        %v581 = vmul.f32 %v554, %v566
        %v582 = vmul.f32 %v555, %v566
        %v583 = vmul.f32 %v556, %v566
        %v584 = vmul.f32 %v557, %v566
        %v585 = vmul.f32 %v558, %v566
        %v586 = vmul.f32 %v559, %v566
        %v587 = vmul.f32 %v560, %v566
        %v588 = vld [vmem:[#allocation11] sm:$0x1]
        %v590 = vlaneseq
        %v591 = vshrl.u32 %v590, 7
        %v592 = vsub.s32 0, %v591
        %v593 = vrot.slane %v588, %v592
        %v595 = vadd.f32 %v568, %v593
        %v596 = vadd.f32 %v569, %v593
        %v597 = vadd.f32 %v570, %v593
        %v598 = vadd.f32 %v571, %v593
        %v599 = vadd.f32 %v572, %v593
        %v600 = vadd.f32 %v573, %v593
        %v601 = vadd.f32 %v574, %v593
        %v602 = vadd.f32 %v575, %v593
        %v603 = vadd.f32 %v576, %v593
        %v604 = vadd.f32 %v577, %v593
        %v605 = vadd.f32 %v578, %v593
        %v606 = vadd.f32 %v579, %v593
        %v607 = vadd.f32 %v580, %v593
        %v608 = vadd.f32 %v581, %v593
        %v609 = vadd.f32 %v582, %v593
        %v610 = vadd.f32 %v583, %v593
        %v611 = vadd.f32 %v584, %v593
        %v612 = vadd.f32 %v585, %v593
        %v613 = vadd.f32 %v586, %v593
        %v614 = vadd.f32 %v587, %v593
        %v615 = vmax.f32 %v595, 0.0
        %v616 = vmax.f32 %v596, 0.0
        %v617 = vmax.f32 %v597, 0.0
        %v618 = vmax.f32 %v598, 0.0
        %v619 = vmax.f32 %v599, 0.0
        %v620 = vmax.f32 %v600, 0.0
        %v621 = vmax.f32 %v601, 0.0
        %v622 = vmax.f32 %v602, 0.0
        %v623 = vmax.f32 %v603, 0.0
        %v624 = vmax.f32 %v604, 0.0
        %v625 = vmax.f32 %v605, 0.0
        %v626 = vmax.f32 %v606, 0.0
        %v627 = vmax.f32 %v607, 0.0
        %v628 = vmax.f32 %v608, 0.0
        %v629 = vmax.f32 %v609, 0.0
        %v630 = vmax.f32 %v610, 0.0
        %v631 = vmax.f32 %v611, 0.0
        %v632 = vmax.f32 %v612, 0.0
        %v633 = vmax.f32 %v613, 0.0
        %v634 = vmax.f32 %v614, 0.0
        %p635 = scmp.gt.s32.totalorder %s36, 0
        %s636 = scalar_select %p635, 1, 0
        %v637 = vstv %s636
        %vm638 = vcmp.eq.s32.totalorder %v637, 1
        %p639 = scmp.lt.s32.totalorder %s36, 1
        %s640 = scalar_select %p639, 1, 0
        %v641 = vstv %s640
        %vm642 = vcmp.eq.s32.totalorder %v641, 1
        %v643 = vsel %vm638, 1, 0
        %v644 = vsel %vm642, 1, 0
        %v645 = vcvt.s32.f32 %v643
        %v646 = vcvt.s32.f32 1
        %v647 = vcvt.s32.f32 %v644
        %v648 = vmul.f32 %v615, %v645
        %v649 = vmul.f32 %v616, %v645
        %v650 = vmul.f32 %v617, %v646
        %v651 = vmul.f32 %v618, %v646
        %v652 = vmul.f32 %v619, %v646
        %v653 = vmul.f32 %v620, %v646
        %v654 = vmul.f32 %v621, %v646
        %v655 = vmul.f32 %v622, %v646
        %v656 = vmul.f32 %v623, %v646
        %v657 = vmul.f32 %v624, %v646
        %v658 = vmul.f32 %v625, %v646
        %v659 = vmul.f32 %v626, %v646
        %v660 = vmul.f32 %v627, %v646
        %v661 = vmul.f32 %v628, %v646
        %v662 = vmul.f32 %v629, %v646
        %v663 = vmul.f32 %v630, %v646
        %v664 = vmul.f32 %v631, %v646
        %v665 = vmul.f32 %v632, %v646
        %v666 = vmul.f32 %v633, %v647
        %v667 = vmul.f32 %v634, %v647
        %v668 = vlaneseq
        %v669 = vshrl.u32 %v668, 7
        %v670 = vadd.s32 %v669, 8
        %v671 = vrot.slane %v648, 7
        %v672 = vrot.slane %v650, 7
        %v673 = vrot.slane %v652, 7
        %v674 = vrot.slane %v654, 7
        %v675 = vrot.slane %v656, 7
        %v676 = vrot.slane %v658, 7
        %v677 = vrot.slane %v660, 7
        %v678 = vrot.slane %v662, 7
        %v679 = vrot.slane %v664, 7
        %v680 = vrot.slane %v666, 7
        %v681 = vrot.slane %v649, 7
        %v682 = vrot.slane %v651, 7
        %v683 = vrot.slane %v653, 7
        %v684 = vrot.slane %v655, 7
        %v685 = vrot.slane %v657, 7
        %v686 = vrot.slane %v659, 7
        %v687 = vrot.slane %v661, 7
        %v688 = vrot.slane %v663, 7
        %v689 = vrot.slane %v665, 7
        %v690 = vrot.slane %v667, 7
        %vm691 = vcmp.lt.s32.totalorder %v669, 1
        %v692 = vsel %vm691, %v671, %v681
        %v693 = vsel %vm691, %v672, %v682
        %v694 = vsel %vm691, %v673, %v683
        %v695 = vsel %vm691, %v674, %v684
        %v696 = vsel %vm691, %v675, %v685
        %v697 = vsel %vm691, %v676, %v686
        %v698 = vsel %vm691, %v677, %v687
        %v699 = vsel %vm691, %v678, %v688
        %v700 = vsel %vm691, %v679, %v689
        %v701 = vsel %vm691, %v680, %v690
        %v702 = vsel %vm691, %v681, %v671
        %v703 = vsel %vm691, %v682, %v672
        %v704 = vsel %vm691, %v683, %v673
        %v705 = vsel %vm691, %v684, %v674
        %v706 = vsel %vm691, %v685, %v675
        %v707 = vsel %vm691, %v686, %v676
        %v708 = vsel %vm691, %v687, %v677
        %v709 = vsel %vm691, %v688, %v678
        %v710 = vsel %vm691, %v689, %v679
        %v711 = vsel %vm691, %v690, %v680
        %vm712 = vcmp.ge.s32.totalorder %v669, 1
        %vm713 = vcmp.ge.s32.totalorder %v670, 1
        %v714 = vsel %vm712, 1, 0
        %v715 = vsel %vm713, 1, 0
        %v716 = vcvt.s32.f32 %v714
        %v717 = vcvt.s32.f32 %v715
        %v718 = vmul.f32 %v702, %v716
        %v719 = vmul.f32 %v692, %v717
        %v720 = vmul.f32 %v703, %v716
        %v721 = vmul.f32 %v693, %v717
        %v722 = vmul.f32 %v704, %v716
        %v723 = vmul.f32 %v694, %v717
        %v724 = vmul.f32 %v705, %v716
        %v725 = vmul.f32 %v695, %v717
        %v726 = vmul.f32 %v706, %v716
        %v727 = vmul.f32 %v696, %v717
        %v728 = vmul.f32 %v707, %v716
        %v729 = vmul.f32 %v697, %v717
        %v730 = vmul.f32 %v708, %v716
        %v731 = vmul.f32 %v698, %v717
        %v732 = vmul.f32 %v709, %v716
        %v733 = vmul.f32 %v699, %v717
        %v734 = vmul.f32 %v710, %v716
        %v735 = vmul.f32 %v700, %v717
        %v736 = vmul.f32 %v711, %v716
        %v737 = vmul.f32 %v701, %v717
        %v738 = vrot.slane %v648, 1
        %v739 = vrot.slane %v650, 1
        %v740 = vrot.slane %v652, 1
        %v741 = vrot.slane %v654, 1
        %v742 = vrot.slane %v656, 1
        %v743 = vrot.slane %v658, 1
        %v744 = vrot.slane %v660, 1
        %v745 = vrot.slane %v662, 1
        %v746 = vrot.slane %v664, 1
        %v747 = vrot.slane %v666, 1
        %v748 = vrot.slane %v649, 1
        %v749 = vrot.slane %v651, 1
        %v750 = vrot.slane %v653, 1
        %v751 = vrot.slane %v655, 1
        %v752 = vrot.slane %v657, 1
        %v753 = vrot.slane %v659, 1
        %v754 = vrot.slane %v661, 1
        %v755 = vrot.slane %v663, 1
        %v756 = vrot.slane %v665, 1
        %v757 = vrot.slane %v667, 1
        %vm758 = vcmp.lt.s32.totalorder %v669, 7
        %v759 = vsel %vm758, %v738, %v748
        %v760 = vsel %vm758, %v739, %v749
        %v761 = vsel %vm758, %v740, %v750
        %v762 = vsel %vm758, %v741, %v751
        %v763 = vsel %vm758, %v742, %v752
        %v764 = vsel %vm758, %v743, %v753
        %v765 = vsel %vm758, %v744, %v754
        %v766 = vsel %vm758, %v745, %v755
        %v767 = vsel %vm758, %v746, %v756
        %v768 = vsel %vm758, %v747, %v757
        %v769 = vsel %vm758, %v748, %v738
        %v770 = vsel %vm758, %v749, %v739
        %v771 = vsel %vm758, %v750, %v740
        %v772 = vsel %vm758, %v751, %v741
        %v773 = vsel %vm758, %v752, %v742
        %v774 = vsel %vm758, %v753, %v743
        %v775 = vsel %vm758, %v754, %v744
        %v776 = vsel %vm758, %v755, %v745
        %v777 = vsel %vm758, %v756, %v746
        %v778 = vsel %vm758, %v757, %v747
        %vm779 = vcmp.le.s32.totalorder %v669, 14
        %vm780 = vcmp.le.s32.totalorder %v670, 14
        %v781 = vsel %vm779, 1, 0
        %v782 = vsel %vm780, 1, 0
        %v783 = vcvt.s32.f32 %v781
        %v784 = vcvt.s32.f32 %v782
        %v785 = vmul.f32 %v759, %v783
        %v786 = vmul.f32 %v769, %v784
        %v787 = vmul.f32 %v760, %v783
        %v788 = vmul.f32 %v770, %v784
        %v789 = vmul.f32 %v761, %v783
        %v790 = vmul.f32 %v771, %v784
        %v791 = vmul.f32 %v762, %v783
        %v792 = vmul.f32 %v772, %v784
        %v793 = vmul.f32 %v763, %v783
        %v794 = vmul.f32 %v773, %v784
        %v795 = vmul.f32 %v764, %v783
        %v796 = vmul.f32 %v774, %v784
        %v797 = vmul.f32 %v765, %v783
        %v798 = vmul.f32 %v775, %v784
        %v799 = vmul.f32 %v766, %v783
        %v800 = vmul.f32 %v776, %v784
        %v801 = vmul.f32 %v767, %v783
        %v802 = vmul.f32 %v777, %v784
        %v803 = vmul.f32 %v768, %v783
        %v804 = vmul.f32 %v778, %v784
        %825 = vrot.lane.b32.xlu0 %v648, 16
        %v826 = vpop.permute.xlu0 %825
        %827 = vrot.lane.b32.xlu0 %v649, 16
        %v828 = vpop.permute.xlu0 %827
        %829 = vrot.lane.b32.xlu0 %v650, 16
        %v830 = vpop.permute.xlu0 %829
        %831 = vrot.lane.b32.xlu0 %v651, 16
        %v832 = vpop.permute.xlu0 %831
        %833 = vrot.lane.b32.xlu0 %v652, 16
        %v834 = vpop.permute.xlu0 %833
        %835 = vrot.lane.b32.xlu0 %v653, 16
        %v836 = vpop.permute.xlu0 %835
        %837 = vrot.lane.b32.xlu0 %v654, 16
        %v838 = vpop.permute.xlu0 %837
        %839 = vrot.lane.b32.xlu0 %v655, 16
        %v840 = vpop.permute.xlu0 %839
        %841 = vrot.lane.b32.xlu0 %v656, 16
        %v842 = vpop.permute.xlu0 %841
        %843 = vrot.lane.b32.xlu0 %v657, 16
        %v844 = vpop.permute.xlu0 %843
        %845 = vrot.lane.b32.xlu0 %v658, 16
        %v846 = vpop.permute.xlu0 %845
        %847 = vrot.lane.b32.xlu0 %v659, 16
        %v848 = vpop.permute.xlu0 %847
        %849 = vrot.lane.b32.xlu0 %v660, 16
        %v850 = vpop.permute.xlu0 %849
        %851 = vrot.lane.b32.xlu0 %v661, 16
        %v852 = vpop.permute.xlu0 %851
        %853 = vrot.lane.b32.xlu0 %v662, 16
        %v854 = vpop.permute.xlu0 %853
        %855 = vrot.lane.b32.xlu0 %v663, 16
        %v856 = vpop.permute.xlu0 %855
        %857 = vrot.lane.b32.xlu0 %v664, 16
        %v858 = vpop.permute.xlu0 %857
        %859 = vrot.lane.b32.xlu0 %v665, 16
        %v860 = vpop.permute.xlu0 %859
        %861 = vrot.lane.b32.xlu0 %v666, 16
        %v862 = vpop.permute.xlu0 %861
        %863 = vrot.lane.b32.xlu0 %v667, 16
        %v864 = vpop.permute.xlu0 %863
        %905 = vrot.lane.b32.xlu0 %v785, 32
        %v906 = vpop.permute.xlu0 %905
        %907 = vrot.lane.b32.xlu0 %v786, 32
        %v908 = vpop.permute.xlu0 %907
        %909 = vrot.lane.b32.xlu0 %v787, 32
        %v910 = vpop.permute.xlu0 %909
        %911 = vrot.lane.b32.xlu0 %v788, 32
        %v912 = vpop.permute.xlu0 %911
        %913 = vrot.lane.b32.xlu0 %v789, 32
        %v914 = vpop.permute.xlu0 %913
        %915 = vrot.lane.b32.xlu0 %v790, 32
        %v916 = vpop.permute.xlu0 %915
        %917 = vrot.lane.b32.xlu0 %v791, 32
        %v918 = vpop.permute.xlu0 %917
        %919 = vrot.lane.b32.xlu0 %v792, 32
        %v920 = vpop.permute.xlu0 %919
        %921 = vrot.lane.b32.xlu0 %v793, 32
        %v922 = vpop.permute.xlu0 %921
        %923 = vrot.lane.b32.xlu0 %v794, 32
        %v924 = vpop.permute.xlu0 %923
        %925 = vrot.lane.b32.xlu0 %v795, 32
        %v926 = vpop.permute.xlu0 %925
        %927 = vrot.lane.b32.xlu0 %v796, 32
        %v928 = vpop.permute.xlu0 %927
        %929 = vrot.lane.b32.xlu0 %v797, 32
        %v930 = vpop.permute.xlu0 %929
        %931 = vrot.lane.b32.xlu0 %v798, 32
        %v932 = vpop.permute.xlu0 %931
        %933 = vrot.lane.b32.xlu0 %v799, 32
        %v934 = vpop.permute.xlu0 %933
        %935 = vrot.lane.b32.xlu0 %v800, 32
        %v936 = vpop.permute.xlu0 %935
        %937 = vrot.lane.b32.xlu0 %v801, 32
        %v938 = vpop.permute.xlu0 %937
        %939 = vrot.lane.b32.xlu0 %v802, 32
        %v940 = vpop.permute.xlu0 %939
        %941 = vrot.lane.b32.xlu0 %v803, 32
        %v942 = vpop.permute.xlu0 %941
        %943 = vrot.lane.b32.xlu0 %v804, 32
        %v944 = vpop.permute.xlu0 %943
        %vm965 = vcmask 130048
        %v966 = vsel %vm965, %v718, %v826
        %v967 = vsel %vm965, %v719, %v828
        %v968 = vsel %vm965, %v720, %v830
        %v969 = vsel %vm965, %v721, %v832
        %v970 = vsel %vm965, %v722, %v834
        %v971 = vsel %vm965, %v723, %v836
        %v972 = vsel %vm965, %v724, %v838
        %v973 = vsel %vm965, %v725, %v840
        %v974 = vsel %vm965, %v726, %v842
        %v975 = vsel %vm965, %v727, %v844
        %v976 = vsel %vm965, %v728, %v846
        %v977 = vsel %vm965, %v729, %v848
        %v978 = vsel %vm965, %v730, %v850
        %v979 = vsel %vm965, %v731, %v852
        %v980 = vsel %vm965, %v732, %v854
        %v981 = vsel %vm965, %v733, %v856
        %v982 = vsel %vm965, %v734, %v858
        %v983 = vsel %vm965, %v735, %v860
        %v984 = vsel %vm965, %v736, %v862
        %v985 = vsel %vm965, %v737, %v864
        %vm986 = vcmask 261120
        %v987 = vsel %vm986, %v966, %v906
        %v988 = vsel %vm986, %v967, %v908
        %v989 = vsel %vm986, %v968, %v910
        %v990 = vsel %vm986, %v969, %v912
        %v991 = vsel %vm986, %v970, %v914
        %v992 = vsel %vm986, %v971, %v916
        %v993 = vsel %vm986, %v972, %v918
        %v994 = vsel %vm986, %v973, %v920
        %v995 = vsel %vm986, %v974, %v922
        %v996 = vsel %vm986, %v975, %v924
        %v997 = vsel %vm986, %v976, %v926
        %v998 = vsel %vm986, %v977, %v928
        %v999 = vsel %vm986, %v978, %v930
        %v1000 = vsel %vm986, %v979, %v932
        %v1001 = vsel %vm986, %v980, %v934
        %v1002 = vsel %vm986, %v981, %v936
        %v1003 = vsel %vm986, %v982, %v938
        %v1004 = vsel %vm986, %v983, %v940
        %v1005 = vsel %vm986, %v984, %v942
        %v1006 = vsel %vm986, %v985, %v944
        %v1007 = vpack.c.bf16 %v988, %v987
        %v1008 = vpack.c.bf16 %v990, %v989
        %v1009 = vpack.c.bf16 %v992, %v991
        %v1010 = vpack.c.bf16 %v994, %v993
        %v1011 = vpack.c.bf16 %v996, %v995
        %v1012 = vpack.c.bf16 %v998, %v997
        %v1013 = vpack.c.bf16 %v1000, %v999
        %v1014 = vpack.c.bf16 %v1002, %v1001
        %v1015 = vpack.c.bf16 %v1004, %v1003
        %v1016 = vpack.c.bf16 %v1006, %v1005
        %v1017 = vld [vmem:[#allocation13] sm:$0xf]
        %v1018 = vld [vmem:[#allocation13 + $0x4] sm:$0xf]
        %v1019 = vld [vmem:[#allocation13 + $0x8] sm:$0xf]
        %v1020 = vld [vmem:[#allocation13 + $0xc] sm:$0xf]
        %v1021 = vld [vmem:[#allocation13 + $0x10] sm:$0xf]
        %v1022 = vld [vmem:[#allocation13 + $0x14] sm:$0xf]
        %v1029 = vunpack.c.l.b16 %v1017
        %v1030 = vunpack.c.l.b16 %v1018
        %v1031 = vunpack.c.l.b16 %v1019
        %v1032 = vunpack.c.l.b16 %v1020
        %v1033 = vunpack.c.l.b16 %v1021
        %v1034 = vunpack.c.l.b16 %v1022
        %v1035 = vpack.c.b16 %v1030, %v1029
        %v1036 = vpack.c.b16 %v1032, %v1031
        %v1037 = vpack.c.b16 %v1034, %v1033
        %vm1041 = vcmask 392192
        %v1043 = vsel %vm1041, %v1007, 0
        %v1046 = vsel %vm1041, %v1008, 0
        %v1049 = vsel %vm1041, %v1009, 0
        %v1052 = vsel %vm1041, %v1010, 0
        %v1055 = vsel %vm1041, %v1011, 0
        %v1058 = vsel %vm1041, %v1012, 0
        %v1061 = vsel %vm1041, %v1013, 0
        %v1064 = vsel %vm1041, %v1014, 0
        %v1067 = vsel %vm1041, %v1015, 0
        %v1070 = vsel %vm1041, %v1016, 0
        %1072 = vmatprep.subr.bf16.mxu0 0
        %1073 = vmatpush1.bf16.msra.mxu0 %v1035
        %1074 = vmatprep.subr.bf16.mxu0 0
        %1075 = vmatpush1.bf16.msra.mxu0 %v1036
        %1076 = vmatprep.subr.bf16.mxu0 0
        %1077 = vmatpush1.bf16.msra.mxu0 %v1037
        %1078 = vmatprep.subr.bf16.mxu0 0
        %1079 = vmatpush1.bf16.msra.mxu0 0
        %1080 = vmatprep.subr.bf16.mxu0 0
        %1081 = vmatpush1.bf16.msra.mxu0 0
        %1082 = vmatprep.subr.bf16.mxu0 0
        %1083 = vmatpush1.bf16.msra.mxu0 0
        %1084 = vmatprep.subr.bf16.mxu0 0
        %1085 = vmatpush1.bf16.msra.mxu0 0
        %1086 = vmatprep.subr.bf16.mxu0 0
        %1087 = vmatpush1.bf16.msra.mxu0 0
        %1088 = vmatprep.subr.bf16.mxu0 0
        %1089 = vmatpush1.bf16.msra.mxu0 0
        %1090 = vmatprep.subr.bf16.mxu0 0
        %1091 = vmatpush1.bf16.msra.mxu0 0
        %1092 = vmatprep.subr.bf16.mxu0 0
        %1093 = vmatpush1.bf16.msra.mxu0 0
        %1094 = vmatprep.subr.bf16.mxu0 0
        %1095 = vmatpush1.bf16.msra.mxu0 0
        %1096 = vmatprep.subr.bf16.mxu0 0
        %1097 = vmatpush1.bf16.msra.mxu0 0
        %1098 = vmatprep.subr.bf16.mxu0 0
        %1099 = vmatpush1.bf16.msra.mxu0 0
        %1100 = vmatprep.subr.bf16.mxu0 0
        %1101 = vmatpush1.bf16.msra.mxu0 0
        %1102 = vmatprep.subr.bf16.mxu0 0
        %1103 = vmatpush1.bf16.msra.mxu0 0
        %1104 = vmatprep.mubr.bf16.mxu0 0
        %1105 = vmatmul.mubr.bf16.gmra.mrb[0].mxu0 %v1043
        %v1106 = vpop.f32.mrb[0].mxu0
        %v1107 = vadd.f32 0.0, %v1106
        %v1108 = vpop.f32.mrb[0].mxu0
        %v1109 = vpop.f32.mrb[0].mxu0
        %v1110 = vadd.f32 0.0, %v1109
        %v1111 = vpop.f32.mrb[0].mxu0
        %1112 = vmatprep.mubr.bf16.mxu0 0
        %1113 = vmatmul.mubr.bf16.gmra.mrb[0].mxu0 %v1046
        %v1114 = vpop.f32.mrb[0].mxu0
        %v1115 = vadd.f32 0.0, %v1114
        %v1116 = vpop.f32.mrb[0].mxu0
        %v1117 = vpop.f32.mrb[0].mxu0
        %v1118 = vadd.f32 0.0, %v1117
        %v1119 = vpop.f32.mrb[0].mxu0
        %1120 = vmatprep.mubr.bf16.mxu0 0
        %1121 = vmatmul.mubr.bf16.gmra.mrb[0].mxu0 %v1049
        %v1122 = vpop.f32.mrb[0].mxu0
        %v1123 = vadd.f32 0.0, %v1122
        %v1124 = vpop.f32.mrb[0].mxu0
        %v1125 = vpop.f32.mrb[0].mxu0
        %v1126 = vadd.f32 0.0, %v1125
        %v1127 = vpop.f32.mrb[0].mxu0
        %1128 = vmatprep.mubr.bf16.mxu0 0
        %1129 = vmatmul.mubr.bf16.gmra.mrb[0].mxu0 %v1052
        %v1130 = vpop.f32.mrb[0].mxu0
        %v1131 = vadd.f32 0.0, %v1130
        %v1132 = vpop.f32.mrb[0].mxu0
        %v1133 = vpop.f32.mrb[0].mxu0
        %v1134 = vadd.f32 0.0, %v1133
        %v1135 = vpop.f32.mrb[0].mxu0
        %1136 = vmatprep.mubr.bf16.mxu0 0
        %1137 = vmatmul.mubr.bf16.gmra.mrb[0].mxu0 %v1055
        %v1138 = vpop.f32.mrb[0].mxu0
        %v1139 = vadd.f32 0.0, %v1138
        %v1140 = vpop.f32.mrb[0].mxu0
        %v1141 = vpop.f32.mrb[0].mxu0
        %v1142 = vadd.f32 0.0, %v1141
        %v1143 = vpop.f32.mrb[0].mxu0
        %1144 = vmatprep.mubr.bf16.mxu0 0
        %1145 = vmatmul.mubr.bf16.gmra.mrb[0].mxu0 %v1058
        %v1146 = vpop.f32.mrb[0].mxu0
        %v1147 = vadd.f32 0.0, %v1146
        %v1148 = vpop.f32.mrb[0].mxu0
        %v1149 = vpop.f32.mrb[0].mxu0
        %v1150 = vadd.f32 0.0, %v1149
        %v1151 = vpop.f32.mrb[0].mxu0
        %1152 = vmatprep.mubr.bf16.mxu0 0
        %1153 = vmatmul.mubr.bf16.gmra.mrb[0].mxu0 %v1061
        %v1154 = vpop.f32.mrb[0].mxu0
        %v1155 = vadd.f32 0.0, %v1154
        %v1156 = vpop.f32.mrb[0].mxu0
        %v1157 = vpop.f32.mrb[0].mxu0
        %v1158 = vadd.f32 0.0, %v1157
        %v1159 = vpop.f32.mrb[0].mxu0
        %1160 = vmatprep.mubr.bf16.mxu0 0
        %1161 = vmatmul.mubr.bf16.gmra.mrb[0].mxu0 %v1064
        %v1162 = vpop.f32.mrb[0].mxu0
        %v1163 = vadd.f32 0.0, %v1162
        %v1164 = vpop.f32.mrb[0].mxu0
        %v1165 = vpop.f32.mrb[0].mxu0
        %v1166 = vadd.f32 0.0, %v1165
        %v1167 = vpop.f32.mrb[0].mxu0
        %1168 = vmatprep.mubr.bf16.mxu0 0
        %1169 = vmatmul.mubr.bf16.gmra.mrb[0].mxu0 %v1067
        %v1170 = vpop.f32.mrb[0].mxu0
        %v1171 = vadd.f32 0.0, %v1170
        %v1172 = vpop.f32.mrb[0].mxu0
        %v1173 = vpop.f32.mrb[0].mxu0
        %v1174 = vadd.f32 0.0, %v1173
        %v1175 = vpop.f32.mrb[0].mxu0
        %1176 = vmatprep.mubr.bf16.mxu0 0
        %1177 = vmatmul.mubr.bf16.gmra.mrb[0].mxu0 %v1070
        %v1178 = vpop.f32.mrb[0].mxu0
        %v1179 = vadd.f32 0.0, %v1178
        %v1180 = vpop.f32.mrb[0].mxu0
        %v1181 = vpop.f32.mrb[0].mxu0
        %v1182 = vadd.f32 0.0, %v1181
        %v1183 = vpop.f32.mrb[0].mxu0
        %1184 = vdwg.mxu0
        %1201 = vrot.lane.b32.xlu0 %v1115, 124
        %v1202 = vpop.permute.xlu0 %1201
        %1203 = vrot.lane.b32.xlu0 %v1118, 124
        %v1204 = vpop.permute.xlu0 %1203
        %1205 = vrot.lane.b32.xlu0 %v1123, 124
        %v1206 = vpop.permute.xlu0 %1205
        %1207 = vrot.lane.b32.xlu0 %v1126, 124
        %v1208 = vpop.permute.xlu0 %1207
        %1209 = vrot.lane.b32.xlu0 %v1131, 124
        %v1210 = vpop.permute.xlu0 %1209
        %1211 = vrot.lane.b32.xlu0 %v1134, 124
        %v1212 = vpop.permute.xlu0 %1211
        %1213 = vrot.lane.b32.xlu0 %v1139, 124
        %v1214 = vpop.permute.xlu0 %1213
        %1215 = vrot.lane.b32.xlu0 %v1142, 124
        %v1216 = vpop.permute.xlu0 %1215
        %1217 = vrot.lane.b32.xlu0 %v1147, 124
        %v1218 = vpop.permute.xlu0 %1217
        %1219 = vrot.lane.b32.xlu0 %v1150, 124
        %v1220 = vpop.permute.xlu0 %1219
        %1221 = vrot.lane.b32.xlu0 %v1155, 124
        %v1222 = vpop.permute.xlu0 %1221
        %1223 = vrot.lane.b32.xlu0 %v1158, 124
        %v1224 = vpop.permute.xlu0 %1223
        %1225 = vrot.lane.b32.xlu0 %v1163, 124
        %v1226 = vpop.permute.xlu0 %1225
        %1227 = vrot.lane.b32.xlu0 %v1166, 124
        %v1228 = vpop.permute.xlu0 %1227
        %1229 = vrot.lane.b32.xlu0 %v1171, 124
        %v1230 = vpop.permute.xlu0 %1229
        %1231 = vrot.lane.b32.xlu0 %v1174, 124
        %v1232 = vpop.permute.xlu0 %1231
        %v1249 = vadd.f32 %v1107, %v1202
        %v1250 = vadd.f32 %v1110, %v1204
        %v1251 = vadd.f32 %v1115, %v1206
        %v1252 = vadd.f32 %v1118, %v1208
        %v1253 = vadd.f32 %v1123, %v1210
        %v1254 = vadd.f32 %v1126, %v1212
        %v1255 = vadd.f32 %v1131, %v1214
        %v1256 = vadd.f32 %v1134, %v1216
        %v1257 = vadd.f32 %v1139, %v1218
        %v1258 = vadd.f32 %v1142, %v1220
        %v1259 = vadd.f32 %v1147, %v1222
        %v1260 = vadd.f32 %v1150, %v1224
        %v1261 = vadd.f32 %v1155, %v1226
        %v1262 = vadd.f32 %v1158, %v1228
        %v1263 = vadd.f32 %v1163, %v1230
        %v1264 = vadd.f32 %v1166, %v1232
        %1267 = vrot.lane.b32.xlu0 %v1123, 120
        %v1268 = vpop.permute.xlu0 %1267
        %1269 = vrot.lane.b32.xlu0 %v1126, 120
        %v1270 = vpop.permute.xlu0 %1269
        %1271 = vrot.lane.b32.xlu0 %v1131, 120
        %v1272 = vpop.permute.xlu0 %1271
        %1273 = vrot.lane.b32.xlu0 %v1134, 120
        %v1274 = vpop.permute.xlu0 %1273
        %1275 = vrot.lane.b32.xlu0 %v1139, 120
        %v1276 = vpop.permute.xlu0 %1275
        %1277 = vrot.lane.b32.xlu0 %v1142, 120
        %v1278 = vpop.permute.xlu0 %1277
        %1279 = vrot.lane.b32.xlu0 %v1147, 120
        %v1280 = vpop.permute.xlu0 %1279
        %1281 = vrot.lane.b32.xlu0 %v1150, 120
        %v1282 = vpop.permute.xlu0 %1281
        %1283 = vrot.lane.b32.xlu0 %v1155, 120
        %v1284 = vpop.permute.xlu0 %1283
        %1285 = vrot.lane.b32.xlu0 %v1158, 120
        %v1286 = vpop.permute.xlu0 %1285
        %1287 = vrot.lane.b32.xlu0 %v1163, 120
        %v1288 = vpop.permute.xlu0 %1287
        %1289 = vrot.lane.b32.xlu0 %v1166, 120
        %v1290 = vpop.permute.xlu0 %1289
        %1291 = vrot.lane.b32.xlu0 %v1171, 120
        %v1292 = vpop.permute.xlu0 %1291
        %1293 = vrot.lane.b32.xlu0 %v1174, 120
        %v1294 = vpop.permute.xlu0 %1293
        %1295 = vrot.lane.b32.xlu0 %v1179, 120
        %v1296 = vpop.permute.xlu0 %1295
        %1297 = vrot.lane.b32.xlu0 %v1182, 120
        %v1298 = vpop.permute.xlu0 %1297
        %v1315 = vadd.f32 %v1249, %v1268
        %v1316 = vadd.f32 %v1250, %v1270
        %v1317 = vadd.f32 %v1251, %v1272
        %v1318 = vadd.f32 %v1252, %v1274
        %v1319 = vadd.f32 %v1253, %v1276
        %v1320 = vadd.f32 %v1254, %v1278
        %v1321 = vadd.f32 %v1255, %v1280
        %v1322 = vadd.f32 %v1256, %v1282
        %v1323 = vadd.f32 %v1257, %v1284
        %v1324 = vadd.f32 %v1258, %v1286
        %v1325 = vadd.f32 %v1259, %v1288
        %v1326 = vadd.f32 %v1260, %v1290
        %v1327 = vadd.f32 %v1261, %v1292
        %v1328 = vadd.f32 %v1262, %v1294
        %v1329 = vadd.f32 %v1263, %v1296
        %v1330 = vadd.f32 %v1264, %v1298
        %vm1331 = vcmask 31744
        %1332 = vst.msk [vmem:[%s508] sm:$0xff] %vm1331, %v1315
        %1333 = vst.msk [vmem:[%s508 + $0x8] sm:$0xff] %vm1331, %v1316
        %1334 = vst.msk [vmem:[%s508 + $0x10] sm:$0xff] %vm1331, %v1317
        %1335 = vst.msk [vmem:[%s508 + $0x18] sm:$0xff] %vm1331, %v1318
        %1336 = vst.msk [vmem:[%s508 + $0x20] sm:$0xff] %vm1331, %v1319
        %1337 = vst.msk [vmem:[%s508 + $0x28] sm:$0xff] %vm1331, %v1320
        %1338 = vst.msk [vmem:[%s508 + $0x30] sm:$0xff] %vm1331, %v1321
        %1339 = vst.msk [vmem:[%s508 + $0x38] sm:$0xff] %vm1331, %v1322
        %1340 = vst.msk [vmem:[%s508 + $0x40] sm:$0xff] %vm1331, %v1323
        %1341 = vst.msk [vmem:[%s508 + $0x48] sm:$0xff] %vm1331, %v1324
        %1342 = vst.msk [vmem:[%s508 + $0x50] sm:$0xff] %vm1331, %v1325
        %1343 = vst.msk [vmem:[%s508 + $0x58] sm:$0xff] %vm1331, %v1326
        %1344 = vst.msk [vmem:[%s508 + $0x60] sm:$0xff] %vm1331, %v1327
        %1345 = vst.msk [vmem:[%s508 + $0x68] sm:$0xff] %vm1331, %v1328
        %1346 = vst.msk [vmem:[%s508 + $0x70] sm:$0xff] %vm1331, %v1329
        %1347 = vst.msk [vmem:[%s508 + $0x78] sm:$0xff] %vm1331, %v1330
        %v1348 = vld [vmem:[%s451] sm:$0xff]
        %v1349 = vld [vmem:[%s451 + $0x8] sm:$0xff]
        %v1350 = vld [vmem:[%s451 + $0x10] sm:$0xff]
        %v1351 = vld [vmem:[%s451 + $0x18] sm:$0xff]
        %v1352 = vld [vmem:[%s451 + $0x20] sm:$0xff]
        %v1353 = vld [vmem:[%s451 + $0x28] sm:$0xff]
        %v1354 = vld [vmem:[%s451 + $0x30] sm:$0xff]
        %v1355 = vld [vmem:[%s451 + $0x38] sm:$0xff]
        %v1356 = vld [vmem:[%s451 + $0x40] sm:$0xff]
        %v1357 = vld [vmem:[%s451 + $0x48] sm:$0xff]
        %v1358 = vld [vmem:[%s451 + $0x50] sm:$0xff]
        %v1359 = vld [vmem:[%s451 + $0x58] sm:$0xff]
        %v1360 = vld [vmem:[%s451 + $0x60] sm:$0xff]
        %v1361 = vld [vmem:[%s451 + $0x68] sm:$0xff]
        %v1362 = vld [vmem:[%s451 + $0x70] sm:$0xff]
        %v1363 = vld [vmem:[%s451 + $0x78] sm:$0xff]
        %1380 = vrot.lane.b32.xlu0 %v1348, 4
        %v1381 = vpop.permute.xlu0 %1380
        %1382 = vrot.lane.b32.xlu0 %v1349, 4
        %v1383 = vpop.permute.xlu0 %1382
        %1384 = vrot.lane.b32.xlu0 %v1350, 4
        %v1385 = vpop.permute.xlu0 %1384
        %1386 = vrot.lane.b32.xlu0 %v1351, 4
        %v1387 = vpop.permute.xlu0 %1386
        %1388 = vrot.lane.b32.xlu0 %v1352, 4
        %v1389 = vpop.permute.xlu0 %1388
        %1390 = vrot.lane.b32.xlu0 %v1353, 4
        %v1391 = vpop.permute.xlu0 %1390
        %1392 = vrot.lane.b32.xlu0 %v1354, 4
        %v1393 = vpop.permute.xlu0 %1392
        %1394 = vrot.lane.b32.xlu0 %v1355, 4
        %v1395 = vpop.permute.xlu0 %1394
        %1396 = vrot.lane.b32.xlu0 %v1356, 4
        %v1397 = vpop.permute.xlu0 %1396
        %1398 = vrot.lane.b32.xlu0 %v1357, 4
        %v1399 = vpop.permute.xlu0 %1398
        %1400 = vrot.lane.b32.xlu0 %v1358, 4
        %v1401 = vpop.permute.xlu0 %1400
        %1402 = vrot.lane.b32.xlu0 %v1359, 4
        %v1403 = vpop.permute.xlu0 %1402
        %1404 = vrot.lane.b32.xlu0 %v1360, 4
        %v1405 = vpop.permute.xlu0 %1404
        %1406 = vrot.lane.b32.xlu0 %v1361, 4
        %v1407 = vpop.permute.xlu0 %1406
        %1408 = vrot.lane.b32.xlu0 %v1362, 4
        %v1409 = vpop.permute.xlu0 %1408
        %1410 = vrot.lane.b32.xlu0 %v1363, 4
        %v1411 = vpop.permute.xlu0 %1410
        %vm1428 = vcmask 64544
        %1429 = vst.msk [vmem:[%s508] sm:$0xff] %vm1428, %v1381
        %1430 = vst.msk [vmem:[%s508 + $0x8] sm:$0xff] %vm1428, %v1383
        %1431 = vst.msk [vmem:[%s508 + $0x10] sm:$0xff] %vm1428, %v1385
        %1432 = vst.msk [vmem:[%s508 + $0x18] sm:$0xff] %vm1428, %v1387
        %1433 = vst.msk [vmem:[%s508 + $0x20] sm:$0xff] %vm1428, %v1389
        %1434 = vst.msk [vmem:[%s508 + $0x28] sm:$0xff] %vm1428, %v1391
        %1435 = vst.msk [vmem:[%s508 + $0x30] sm:$0xff] %vm1428, %v1393
        %1436 = vst.msk [vmem:[%s508 + $0x38] sm:$0xff] %vm1428, %v1395
        %1437 = vst.msk [vmem:[%s508 + $0x40] sm:$0xff] %vm1428, %v1397
        %1438 = vst.msk [vmem:[%s508 + $0x48] sm:$0xff] %vm1428, %v1399
        %1439 = vst.msk [vmem:[%s508 + $0x50] sm:$0xff] %vm1428, %v1401
        %1440 = vst.msk [vmem:[%s508 + $0x58] sm:$0xff] %vm1428, %v1403
        %1441 = vst.msk [vmem:[%s508 + $0x60] sm:$0xff] %vm1428, %v1405
        %1442 = vst.msk [vmem:[%s508 + $0x68] sm:$0xff] %vm1428, %v1407
        %1443 = vst.msk [vmem:[%s508 + $0x70] sm:$0xff] %vm1428, %v1409
        %1444 = vst.msk [vmem:[%s508 + $0x78] sm:$0xff] %vm1428, %v1411
        %s1445 = sand.u32 %s244, 1
        %s1446 = scalar_lea.sflag [#allocation4], %s1445
        %s1447 = sand.u32 %s244, 1
        %s1448 = smul.addr %s1447, 128
        %s1449 = scalar_lea.vmem [#allocation14], %s1448
        // Predicated region
        $region77: #{bottleneck_forward.5} parent=47 // pred_check
          %p1450 = pneg %p254
        $region78: #{bottleneck_forward.5} parent=47 // pred_check_branch
          %1452 = sbr.rel (%p1450) target = $region80
        $region79: #{bottleneck_forward.5} parent=47 // pred_region
          %s1453 = smul.u32 8, %s36
          %s1455 = ssub.s32 2048, 2048
          %1456 = vsyncadd %s1446, %s1455
          %s1457 = smul.addr %s1453, 2
          %s1458 = smul.addr %s35, 32
          %s1459 = sadd.s32 %s1457, %s1458
          %s1460 = smul.addr %s1459, 128
          %s1461 = scalar_lea.hbm %s7, %s1460
          %s1462 = sshll.u32 %s1449, 4
          %s1463 = int_to_ptr.vmem [resolvable:$true] %s1462
          %1468 = dma.vmem_to_hbm [thread:$0]  %s1463, 2048, %s1461, %s1446, 128, 128, 8
        $region80: #{bottleneck_forward.5} parent=47 // pred_fallthru
          _
      $region48: #{bottleneck_forward.5} parent=5 // pred_fallthru
        _
      %p1469 = scmp.le.s32.totalorder 2, %s26
      // Predicated region
      $region81: #{bottleneck_forward.5} parent=5 // pred_check
        %p1470 = pneg %p1469
      $region82: #{bottleneck_forward.5} parent=5 // pred_check_branch
        %1472 = sbr.rel (%p1470) target = $region84
      $region83: #{bottleneck_forward.5} parent=5 // pred_region
        %s1473 = ssub.s32 %s26, 2
        // Predicated region
        $region85: #{bottleneck_forward.5} parent=83 // pred_check
          %p1474 = pneg %p260
        $region86: #{bottleneck_forward.5} parent=83 // pred_check_branch
          %1476 = sbr.rel (%p1474) target = $region88
        $region87: #{bottleneck_forward.5} parent=83 // pred_region
          %s1477 = sand.u32 %s245, 1
          %s1478 = scalar_lea.sflag [#allocation4], %s1477
          %s1479 = sand.u32 %s245, 1
          %s1480 = smul.addr %s1479, 128
          %s1481 = scalar_lea.vmem [#allocation14], %s1480
          %1482 = dma.done %s1478, 2048
        $region88: #{bottleneck_forward.5} parent=83 // pred_fallthru
          _
      $region84: #{bottleneck_forward.5} parent=5 // pred_fallthru
        _
    $region6: #{bottleneck_forward.5} parent=1 // loop_footer
      %s30 = sadd.s32 1, %s26
    $region7: #{bottleneck_forward.5} parent=1 // loop_footer_branch
      %25 = sbr.rel target = $region3
    $region8: #{bottleneck_forward.5} parent=1 // loop_exit
      _
    %1483 = vsyncpa [#allocation3], 1
    %s1484 = scalar_lea.sflag [#allocation3], 1
    %1485 = vsyncpa %s1484, 1
    %1486 = vsyncpa [#allocation6], 1
    %s1487 = scalar_lea.sflag [#allocation6], 1
    %1488 = vsyncpa %s1487, 1
    %1489 = vsyncpa [#allocation9], 1
    %s1490 = scalar_lea.sflag [#allocation9], 1
    %1491 = vsyncpa %s1490, 1
    %1492 = vsyncpa [#allocation12], 1
    %1493 = vsyncpa [#allocation4], 1
    %s1494 = scalar_lea.sflag [#allocation4], 1
    %1495 = vsyncpa %s1494, 1

</llo_original>
